<compile_context>
chip_gen: v7x
topology: tpu7x:2x2x1
jax: 0.10.0
libtpu: 0.0.40
codegen_flags: <defaults>
</compile_context>

<pallas_src>
import jax
import jax.numpy as jnp
from jax.experimental import pallas as pl
from jax.experimental.pallas import tpu as pltpu


def _row_matvec_kernel(x_ref, at_ref, o_ref):
    # x_ref: (1, N) bf16 row (resident), at_ref: (N, tn) bf16 tile of A^T,
    # o_ref: (1, tn) f32 lane-dense output tile.
    o_ref[...] = jnp.dot(
        x_ref[...], at_ref[...], preferred_element_type=jnp.float32
    )


def sparse_mat_layer_forward(A, x, out_shape, *, tn=256):
    """Equivalent of sparse_Mat_Layer(A, out_shape).forward(x)."""
    M, N = A.shape

    # Column-tile width: multiple of 128, no larger than padded M.
    tn = min(tn, max(128, ((M + 127) // 128) * 128))
    m_pad = pl.cdiv(M, tn) * tn

    # Layout plumbing in JAX: lane-dense row vector + transposed, bf16 A.
    x_row = x.reshape(1, N).astype(jnp.bfloat16)
    a_t = A.T.astype(jnp.bfloat16)          # (N, M)
    if m_pad != M:
        a_t = jnp.pad(a_t, ((0, 0), (0, m_pad - M)))

    y = pl.pallas_call(
        _row_matvec_kernel,
        out_shape=jax.ShapeDtypeStruct((1, m_pad), jnp.float32),
        grid_spec=pltpu.PrefetchScalarGridSpec(
            num_scalar_prefetch=0,
            grid=(m_pad // tn,),
            in_specs=[
                pl.BlockSpec((1, N), lambda j: (0, 0)),    # x row (same block every step)
                pl.BlockSpec((N, tn), lambda j: (0, j)),   # column tile of A^T
            ],
            out_specs=pl.BlockSpec((1, tn), lambda j: (0, j)),
        ),
        compiler_params=pltpu.CompilerParams(
            dimension_semantics=("parallel",),
        ),
        cost_estimate=pl.CostEstimate(
            flops=2 * M * N,
            transcendentals=0,
            bytes_accessed=(
                a_t.size * a_t.dtype.itemsize
                + x_row.size * x_row.dtype.itemsize
                + m_pad * 4
            ),
        ),
    )(x_row, a_t)

    return y[:, :M].reshape(out_shape).astype(jnp.float32)


if __name__ == "__main__":
    key = jax.random.PRNGKey(0)
    k_x, k_val, k_mask = jax.random.split(key, 3)

    # Small shapes consistent with the module:
    #   x: (2, 4, 16, 16)  -> N = 2048
    #   out_shape: (2, 4, 8, 8) -> M = 512
    x = jax.random.normal(k_x, (2, 4, 16, 16), dtype=jnp.float32)
    out_shape = (2, 4, 8, 8)
    N = x.size
    M = 2 * 4 * 8 * 8

    # Deterministic "sparse" matrix A: ~90% of entries zeroed out.
    vals = jax.random.normal(k_val, (M, N), dtype=jnp.float32)
    mask = jax.random.bernoulli(k_mask, p=0.1, shape=(M, N))
    A = jnp.where(mask, vals, 0.0).astype(jnp.float32)

    out = sparse_mat_layer_forward(A, x, out_shape)
    out = jax.block_until_ready(out)

    assert out.shape == out_shape and out.dtype == jnp.float32

    # Tight check vs a reference with the same bf16 input rounding (f32 accum),
    # looser check vs the pure-f32 module semantics (bf16 stream of A).
    x_col = x.reshape(N, 1)
    a_bf = A.astype(jnp.bfloat16).astype(jnp.float32)
    x_bf = x_col.astype(jnp.bfloat16).astype(jnp.float32)
    ref_bf = (a_bf @ x_bf).reshape(out_shape)
    ref_f32 = (A @ x_col).reshape(out_shape)
    assert jnp.allclose(out, ref_bf, atol=1e-2, rtol=1e-3)
    assert jnp.allclose(out, ref_f32, atol=0.5, rtol=0.05)

    print("KERNEL_OK")
</pallas_src>

<mosaic_0001>
module attributes {stable_mosaic.version = 11 : i64} {
  func.func @_row_matvec_kernel(%arg0: i32, %arg1: memref<1x2048xbf16, #tpu.memory_space<vmem>>, %arg2: memref<2048x256xbf16, #tpu.memory_space<vmem>>, %arg3: memref<1x256xf32, #tpu.memory_space<vmem>>) attributes {dimension_semantics = [#tpu.dimension_semantics<parallel>], iteration_bounds = array<i64: 2>, scalar_prefetch = 0 : i64, scratch_operands = 0 : i64, tpu.core_type = #tpu.core_type<tc>, window_params = [{pipeline_mode = #tpu.pipeline_mode<synchronous>, transform_indices = @transform_0, window_bounds = array<i64: 1, 2048>}, {transform_indices = @transform_1, window_bounds = array<i64: 2048, 256>}, {transform_indices = @transform_2, window_bounds = array<i64: 1, 256>}]} {
    %c0 = arith.constant 0 : index
    %c0_0 = arith.constant 0 : index
    %0 = vector.load %arg1[%c0, %c0_0] : memref<1x2048xbf16, #tpu.memory_space<vmem>>, vector<1x2048xbf16>
    %c0_1 = arith.constant 0 : index
    %c0_2 = arith.constant 0 : index
    %1 = vector.load %arg2[%c0_1, %c0_2] : memref<2048x256xbf16, #tpu.memory_space<vmem>>, vector<2048x256xbf16>
    %cst = arith.constant dense<0.000000e+00> : vector<1x256xf32>
    %2 = tpu.matmul %0, %1, %cst {dimension_numbers = #tpu.dot_dimension_numbers<[1], [0], [0], [1], [0, 0, 1, 1], [], []>} : vector<1x2048xbf16>, vector<2048x256xbf16>, vector<1x256xf32> -> vector<1x256xf32>
    %c0_3 = arith.constant 0 : index
    %c0_4 = arith.constant 0 : index
    %3 = vector.load %arg3[%c0_3, %c0_4] : memref<1x256xf32, #tpu.memory_space<vmem>>, vector<1x256xf32>
    tpu.vector_store %arg3[%c0_3, %c0_4], %2 {strides = array<i32>} : memref<1x256xf32, #tpu.memory_space<vmem>>, vector<1x256xf32>,
    return
  }
  func.func @transform_0(%arg0: i32) -> (i32, i32) {
    %c0_i32 = arith.constant 0 : i32
    %c0_i32_0 = arith.constant 0 : i32
    %c0_i32_1 = arith.constant 0 : i32
    return %c0_i32, %c0_i32_0 : i32, i32
  }
  func.func @transform_1(%arg0: i32) -> (i32, i32) {
    %c0_i32 = arith.constant 0 : i32
    %c0_i32_0 = arith.constant 0 : i32
    return %c0_i32, %arg0 : i32, i32
  }
  func.func @transform_2(%arg0: i32) -> (i32, i32) {
    %c0_i32 = arith.constant 0 : i32
    %c0_i32_0 = arith.constant 0 : i32
    return %c0_i32, %arg0 : i32, i32
  }
}

</mosaic_0001>

<llo_original>
// kernel: tpu_custom_call.1
$region0: #{tpu_custom_call.1}
  #allocation0 [shape = 'u32[]', space=smem, size = 0x4, offset = 0x4, fixed_abs, tag = 'smem constant byte address 0x4 - core index']
  #allocation1 [shape = 'u32[144,128]{1,0:T(1,128)}', space=vmem, size = 0x12000, scoped, tag = 'internal scratch']
  %s0 = inlined_call_operand.hbm [shape: bf16[1,2048], index: 0, kind: input, shape index: {}]
  %s1 = inlined_call_operand.hbm [shape: bf16[2048,512], index: 1, kind: input, shape index: {}]
  %s2 = inlined_call_operand.hbm [shape: f32[1,512], index: 2, kind: output, shape index: {}]
  %s3 = sld [smem:[#allocation0]]
  $region49: #{tpu_custom_call.1} parent=0
    _
  %s5 = ssub.s32 1, %s3
  %s6 = scalar_select 0, %s5, %s3
  $region1: #{tpu_custom_call.1} parent=0
    #allocation2 [shape = 'u8[8192]{0}', space=vmem, size = 0x2000, scoped, tag = 'input window, operand 0, single buffered']
    #allocation3 [shape = 's32[2]{0}', space=sflag, size = 0x8, scoped, tag = 'scoped memory for tpu_custom_call.1']
    #allocation4 [shape = 's32[2]{0}', space=sflag, size = 0x8, scoped, tag = 'scoped memory for tpu_custom_call.1']
    #allocation5 [shape = 'u8[2097152]{0}', space=vmem, size = 0x200000, scoped, tag = 'input window, operand 1']
    #allocation6 [shape = 's32[2]{0}', space=sflag, size = 0x8, scoped, tag = 'scoped memory for tpu_custom_call.1']
    #allocation7 [shape = 'u8[2048]{0}', space=vmem, size = 0x800, scoped, tag = 'output window, operand 0']
    %7 = vsyncpa [#allocation3], 0
    %8 = vsyncpa [#allocation6], 0
    %s9 = scalar_lea.sflag [#allocation6], 1
    %10 = vsyncpa %s9, 0
    %11 = vsyncpa [#allocation4], 0
    %s12 = scalar_lea.sflag [#allocation4], 1
    %13 = vsyncpa %s12, 0
    loop: start=0, step=1, limit=4
    $region2: #{tpu_custom_call.1} parent=1 // loop_pre_header
      _
    $region3: #{tpu_custom_call.1} parent=1 // loop_header
      %s15 = sphi 0, %s19
      %p16 = scmp.ge.s32.totalorder %s15, 4
      %s23 = sphi 0, %s23
      %s25 = sphi 0, %s23
      %s26 = sphi 0, %s25
      %s40 = sphi 0, %s26
      %s46 = sphi 0, %s48
      %s49 = sphi 0, %s46
      %s50 = sphi 0, %s49
      %s66 = sphi 0, %s50
      %s72 = sphi 0, %s74
      %s75 = sphi 0, %s72
      %s76 = sphi 0, %s75
      %s92 = sphi 0, %s76
    $region4: #{tpu_custom_call.1} parent=1 // loop_header_branch
      %18 = sbr.rel (%p16) target = $region8
    $region5: #{tpu_custom_call.1} parent=1 // loop_body
      %s20 = ssub.s32 %s15, 1
      %s21 = ssub.s32 %s15, 2
      %s22 = sadd.s32 %s15, 1
      %s24 = sadd.s32 %s23, 1
      %p27 = scmp.eq.s32.totalorder %s15, 1
      %p28 = scmp.ne.s32.totalorder %s23, %s25
      %p29 = scmp.eq.s32.totalorder %s15, 0
      %p30 = por %p28, %p29
      %p31 = scmp.ne.s32.totalorder %s23, %s25
      %p32 = scmp.eq.s32.totalorder %s20, 1
      %p33 = por %p31, %p32
      %p34 = scmp.ne.s32.totalorder %s25, %s26
      %p35 = scmp.eq.s32.totalorder %s20, 0
      %p36 = por %p34, %p35
      %p37 = scmp.ne.s32.totalorder %s25, %s26
      %p38 = scmp.eq.s32.totalorder %s21, 1
      %p39 = por %p37, %p38
      %p41 = scmp.ne.s32.totalorder %s26, %s40
      %p42 = scmp.eq.s32.totalorder %s21, 0
      %p43 = por %p41, %p42
      %s44 = ssub.s32 %s15, %s22
      %p45 = scmp.eq.s32.totalorder %s44, 0
      %s47 = sadd.s32 %s46, 1
      %s48 = scalar_select %p45, %s46, %s47
      %p51 = pneg %p45
      %p52 = scmp.eq.s32.totalorder %s15, 1
      %p53 = por %p51, %p52
      %p54 = scmp.ne.s32.totalorder %s46, %s49
      %p55 = scmp.eq.s32.totalorder %s15, 0
      %p56 = por %p54, %p55
      %p57 = scmp.ne.s32.totalorder %s46, %s49
      %p58 = scmp.eq.s32.totalorder %s20, 1
      %p59 = por %p57, %p58
      %p60 = scmp.ne.s32.totalorder %s49, %s50
      %p61 = scmp.eq.s32.totalorder %s20, 0
      %p62 = por %p60, %p61
      %p63 = scmp.ne.s32.totalorder %s49, %s50
      %p64 = scmp.eq.s32.totalorder %s21, 1
      %p65 = por %p63, %p64
      %p67 = scmp.ne.s32.totalorder %s50, %s66
      %p68 = scmp.eq.s32.totalorder %s21, 0
      %p69 = por %p67, %p68
      %s70 = ssub.s32 %s15, %s22
      %p71 = scmp.eq.s32.totalorder %s70, 0
      %s73 = sadd.s32 %s72, 1
      %s74 = scalar_select %p71, %s72, %s73
      %p77 = pneg %p71
      %p78 = scmp.eq.s32.totalorder %s15, 1
      %p79 = por %p77, %p78
      %p80 = scmp.ne.s32.totalorder %s72, %s75
      %p81 = scmp.eq.s32.totalorder %s15, 0
      %p82 = por %p80, %p81
      %p83 = scmp.ne.s32.totalorder %s72, %s75
      %p84 = scmp.eq.s32.totalorder %s20, 1
      %p85 = por %p83, %p84
      %p86 = scmp.ne.s32.totalorder %s75, %s76
      %p87 = scmp.eq.s32.totalorder %s20, 0
      %p88 = por %p86, %p87
      %p89 = scmp.ne.s32.totalorder %s75, %s76
      %p90 = scmp.eq.s32.totalorder %s21, 1
      %p91 = por %p89, %p90
      %p93 = scmp.ne.s32.totalorder %s76, %s92
      %p94 = scmp.eq.s32.totalorder %s21, 0
      %p95 = por %p93, %p94
      %p96 = scmp.le.s32.totalorder 1, %s15
      %p97 = scmp.lt.s32.totalorder %s15, 3
      %p98 = pnand %p96, %p97
      %p99 = pneg %p98
      // Predicated region
      $region9: #{tpu_custom_call.1} parent=5 // pred_check
        _
      $region10: #{tpu_custom_call.1} parent=5 // pred_check_branch
        %101 = sbr.rel (%p98) target = $region12
      $region11: #{tpu_custom_call.1} parent=5 // pred_region
        %s102 = ssub.s32 %s15, 1
        // Predicated region
        $region13: #{tpu_custom_call.1} parent=11 // pred_check
          %p103 = pneg %p36
        $region14: #{tpu_custom_call.1} parent=11 // pred_check_branch
          %105 = sbr.rel (%p103) target = $region16
        $region15: #{tpu_custom_call.1} parent=11 // pred_region
          %s107 = ssub.s32 256, 256
          %108 = vsyncadd [#allocation3], %s107
          %s110 = sshll.u32 [#allocation2], 4
          %s111 = int_to_ptr.vmem [resolvable:$true] %s110
          %113 = dma.hbm_to_vmem [thread:$0]  %s0, 256, %s111, [#allocation3]
        $region16: #{tpu_custom_call.1} parent=11 // pred_fallthru
          _
      $region12: #{tpu_custom_call.1} parent=5 // pred_fallthru
        _
      %p114 = scmp.lt.s32.totalorder %s15, 2
      // Predicated region
      $region17: #{tpu_custom_call.1} parent=5 // pred_check
        %p115 = pneg %p114
      $region18: #{tpu_custom_call.1} parent=5 // pred_check_branch
        %117 = sbr.rel (%p115) target = $region20
      $region19: #{tpu_custom_call.1} parent=5 // pred_region
        // Predicated region
        $region21: #{tpu_custom_call.1} parent=19 // pred_check
          %p118 = pneg %p56
        $region22: #{tpu_custom_call.1} parent=19 // pred_check_branch
          %120 = sbr.rel (%p118) target = $region24
        $region23: #{tpu_custom_call.1} parent=19 // pred_region
          %s121 = sand.u32 %s46, 1
          %s122 = scalar_lea.sflag [#allocation6], %s121
          %s123 = sand.u32 %s46, 1
          %s124 = smul.addr %s123, 2048
          %s125 = scalar_lea.vmem [#allocation5], %s124
          %s126 = smul.u32 2, %s15
          %s128 = ssub.s32 32768, 32768
          %129 = vsyncadd %s122, %s128
          %s130 = smul.addr %s126, 64
          %s131 = scalar_lea.hbm %s1, %s130
          %s132 = sshll.u32 %s125, 4
          %s133 = int_to_ptr.vmem [resolvable:$true] %s132
          %138 = dma.hbm_to_vmem [thread:$0]  %s131, 32768, %s133, %s122, 256, 128, 8
        $region24: #{tpu_custom_call.1} parent=19 // pred_fallthru
          _
      $region20: #{tpu_custom_call.1} parent=5 // pred_fallthru
        _
      %p139 = scmp.le.s32.totalorder 1, %s15
      %p140 = scmp.lt.s32.totalorder %s15, 3
      %p141 = pnand %p139, %p140
      %p142 = pneg %p141
      // Predicated region
      $region25: #{tpu_custom_call.1} parent=5 // pred_check
        _
      $region26: #{tpu_custom_call.1} parent=5 // pred_check_branch
        %144 = sbr.rel (%p141) target = $region28
      $region27: #{tpu_custom_call.1} parent=5 // pred_region
        %s145 = ssub.s32 %s15, 1
        // Predicated region
        $region29: #{tpu_custom_call.1} parent=27 // pred_check
          %p146 = pneg %p36
        $region30: #{tpu_custom_call.1} parent=27 // pred_check_branch
          %148 = sbr.rel (%p146) target = $region32
        $region31: #{tpu_custom_call.1} parent=27 // pred_region
          %149 = dma.done [#allocation3], 256
        $region32: #{tpu_custom_call.1} parent=27 // pred_fallthru
          _
        %s150 = sand.u32 %s49, 1
        %s151 = scalar_lea.sflag [#allocation6], %s150
        %s152 = sand.u32 %s49, 1
        %s153 = smul.addr %s152, 2048
        %s154 = scalar_lea.vmem [#allocation5], %s153
        // Predicated region
        $region33: #{tpu_custom_call.1} parent=27 // pred_check
          %p155 = pneg %p62
        $region34: #{tpu_custom_call.1} parent=27 // pred_check_branch
          %157 = sbr.rel (%p155) target = $region36
        $region35: #{tpu_custom_call.1} parent=27 // pred_region
          %158 = dma.done %s151, 32768
        $region36: #{tpu_custom_call.1} parent=27 // pred_fallthru
          _
        %p159 = pneg %p36
        %p160 = pneg %p33
        %s161 = sand.u32 %s49, 1
        %s162 = scalar_lea.sflag [#allocation6], %s161
        %s163 = sand.u32 %s49, 1
        %s164 = smul.addr %s163, 2048
        %s165 = scalar_lea.vmem [#allocation5], %s164
        %p166 = pneg %p62
        %p167 = pneg %p59
        %p168 = pneg %p88
        %p169 = pneg %p85
        %s170 = sand.u32 %s75, 1
        %s171 = scalar_lea.sflag [#allocation4], %s170
        %s172 = sand.u32 %s75, 1
        %s173 = smul.addr %s172, 2
        %s174 = scalar_lea.vmem [#allocation7], %s173
        %s175 = smul.u32 2, %s20
        %s176 = smul.u32 2, %s20
        %v177 = vld [vmem:[#allocation2] sm:$0xff]
        %v178 = vld [vmem:[#allocation2 + $0x8] sm:$0xff]
        %v179 = vld [vmem:[%s154] sm:$0xff]
        %v180 = vld [vmem:[%s154 + $0x8] sm:$0xff]
        %v181 = vld [vmem:[%s154 + $0x10] sm:$0xff]
        %v182 = vld [vmem:[%s154 + $0x18] sm:$0xff]
        %v183 = vld [vmem:[%s154 + $0x20] sm:$0xff]
        %v184 = vld [vmem:[%s154 + $0x28] sm:$0xff]
        %v185 = vld [vmem:[%s154 + $0x30] sm:$0xff]
        %v186 = vld [vmem:[%s154 + $0x38] sm:$0xff]
        %v187 = vld [vmem:[%s154 + $0x40] sm:$0xff]
        %v188 = vld [vmem:[%s154 + $0x48] sm:$0xff]
        %v189 = vld [vmem:[%s154 + $0x50] sm:$0xff]
        %v190 = vld [vmem:[%s154 + $0x58] sm:$0xff]
        %v191 = vld [vmem:[%s154 + $0x60] sm:$0xff]
        %v192 = vld [vmem:[%s154 + $0x68] sm:$0xff]
        %v193 = vld [vmem:[%s154 + $0x70] sm:$0xff]
        %v194 = vld [vmem:[%s154 + $0x78] sm:$0xff]
        %v195 = vld [vmem:[%s154 + $0x80] sm:$0xff]
        %v196 = vld [vmem:[%s154 + $0x88] sm:$0xff]
        %v197 = vld [vmem:[%s154 + $0x90] sm:$0xff]
        %v198 = vld [vmem:[%s154 + $0x98] sm:$0xff]
        %v199 = vld [vmem:[%s154 + $0xa0] sm:$0xff]
        %v200 = vld [vmem:[%s154 + $0xa8] sm:$0xff]
        %v201 = vld [vmem:[%s154 + $0xb0] sm:$0xff]
        %v202 = vld [vmem:[%s154 + $0xb8] sm:$0xff]
        %v203 = vld [vmem:[%s154 + $0xc0] sm:$0xff]
        %v204 = vld [vmem:[%s154 + $0xc8] sm:$0xff]
        %v205 = vld [vmem:[%s154 + $0xd0] sm:$0xff]
        %v206 = vld [vmem:[%s154 + $0xd8] sm:$0xff]
        %v207 = vld [vmem:[%s154 + $0xe0] sm:$0xff]
        %v208 = vld [vmem:[%s154 + $0xe8] sm:$0xff]
        %v209 = vld [vmem:[%s154 + $0xf0] sm:$0xff]
        %v210 = vld [vmem:[%s154 + $0xf8] sm:$0xff]
        %v211 = vld [vmem:[%s154 + $0x100] sm:$0xff]
        %v212 = vld [vmem:[%s154 + $0x108] sm:$0xff]
        %v213 = vld [vmem:[%s154 + $0x110] sm:$0xff]
        %v214 = vld [vmem:[%s154 + $0x118] sm:$0xff]
        %v215 = vld [vmem:[%s154 + $0x120] sm:$0xff]
        %v216 = vld [vmem:[%s154 + $0x128] sm:$0xff]
        %v217 = vld [vmem:[%s154 + $0x130] sm:$0xff]
        %v218 = vld [vmem:[%s154 + $0x138] sm:$0xff]
        %v219 = vld [vmem:[%s154 + $0x140] sm:$0xff]
        %v220 = vld [vmem:[%s154 + $0x148] sm:$0xff]
        %v221 = vld [vmem:[%s154 + $0x150] sm:$0xff]
        %v222 = vld [vmem:[%s154 + $0x158] sm:$0xff]
        %v223 = vld [vmem:[%s154 + $0x160] sm:$0xff]
        %v224 = vld [vmem:[%s154 + $0x168] sm:$0xff]
        %v225 = vld [vmem:[%s154 + $0x170] sm:$0xff]
        %v226 = vld [vmem:[%s154 + $0x178] sm:$0xff]
        %v227 = vld [vmem:[%s154 + $0x180] sm:$0xff]
        %v228 = vld [vmem:[%s154 + $0x188] sm:$0xff]
        %v229 = vld [vmem:[%s154 + $0x190] sm:$0xff]
        %v230 = vld [vmem:[%s154 + $0x198] sm:$0xff]
        %v231 = vld [vmem:[%s154 + $0x1a0] sm:$0xff]
        %v232 = vld [vmem:[%s154 + $0x1a8] sm:$0xff]
        %v233 = vld [vmem:[%s154 + $0x1b0] sm:$0xff]
        %v234 = vld [vmem:[%s154 + $0x1b8] sm:$0xff]
        %v235 = vld [vmem:[%s154 + $0x1c0] sm:$0xff]
        %v236 = vld [vmem:[%s154 + $0x1c8] sm:$0xff]
        %v237 = vld [vmem:[%s154 + $0x1d0] sm:$0xff]
        %v238 = vld [vmem:[%s154 + $0x1d8] sm:$0xff]
        %v239 = vld [vmem:[%s154 + $0x1e0] sm:$0xff]
        %v240 = vld [vmem:[%s154 + $0x1e8] sm:$0xff]
        %v241 = vld [vmem:[%s154 + $0x1f0] sm:$0xff]
        %v242 = vld [vmem:[%s154 + $0x1f8] sm:$0xff]
        %v243 = vld [vmem:[%s154 + $0x200] sm:$0xff]
        %v244 = vld [vmem:[%s154 + $0x208] sm:$0xff]
        %v245 = vld [vmem:[%s154 + $0x210] sm:$0xff]
        %v246 = vld [vmem:[%s154 + $0x218] sm:$0xff]
        %v247 = vld [vmem:[%s154 + $0x220] sm:$0xff]
        %v248 = vld [vmem:[%s154 + $0x228] sm:$0xff]
        %v249 = vld [vmem:[%s154 + $0x230] sm:$0xff]
        %v250 = vld [vmem:[%s154 + $0x238] sm:$0xff]
        %v251 = vld [vmem:[%s154 + $0x240] sm:$0xff]
        %v252 = vld [vmem:[%s154 + $0x248] sm:$0xff]
        %v253 = vld [vmem:[%s154 + $0x250] sm:$0xff]
        %v254 = vld [vmem:[%s154 + $0x258] sm:$0xff]
        %v255 = vld [vmem:[%s154 + $0x260] sm:$0xff]
        %v256 = vld [vmem:[%s154 + $0x268] sm:$0xff]
        %v257 = vld [vmem:[%s154 + $0x270] sm:$0xff]
        %v258 = vld [vmem:[%s154 + $0x278] sm:$0xff]
        %v259 = vld [vmem:[%s154 + $0x280] sm:$0xff]
        %v260 = vld [vmem:[%s154 + $0x288] sm:$0xff]
        %v261 = vld [vmem:[%s154 + $0x290] sm:$0xff]
        %v262 = vld [vmem:[%s154 + $0x298] sm:$0xff]
        %v263 = vld [vmem:[%s154 + $0x2a0] sm:$0xff]
        %v264 = vld [vmem:[%s154 + $0x2a8] sm:$0xff]
        %v265 = vld [vmem:[%s154 + $0x2b0] sm:$0xff]
        %v266 = vld [vmem:[%s154 + $0x2b8] sm:$0xff]
        %v267 = vld [vmem:[%s154 + $0x2c0] sm:$0xff]
        %v268 = vld [vmem:[%s154 + $0x2c8] sm:$0xff]
        %v269 = vld [vmem:[%s154 + $0x2d0] sm:$0xff]
        %v270 = vld [vmem:[%s154 + $0x2d8] sm:$0xff]
        %v271 = vld [vmem:[%s154 + $0x2e0] sm:$0xff]
        %v272 = vld [vmem:[%s154 + $0x2e8] sm:$0xff]
        %v273 = vld [vmem:[%s154 + $0x2f0] sm:$0xff]
        %v274 = vld [vmem:[%s154 + $0x2f8] sm:$0xff]
        %v275 = vld [vmem:[%s154 + $0x300] sm:$0xff]
        %v276 = vld [vmem:[%s154 + $0x308] sm:$0xff]
        %v277 = vld [vmem:[%s154 + $0x310] sm:$0xff]
        %v278 = vld [vmem:[%s154 + $0x318] sm:$0xff]
        %v279 = vld [vmem:[%s154 + $0x320] sm:$0xff]
        %v280 = vld [vmem:[%s154 + $0x328] sm:$0xff]
        %v281 = vld [vmem:[%s154 + $0x330] sm:$0xff]
        %v282 = vld [vmem:[%s154 + $0x338] sm:$0xff]
        %v283 = vld [vmem:[%s154 + $0x340] sm:$0xff]
        %v284 = vld [vmem:[%s154 + $0x348] sm:$0xff]
        %v285 = vld [vmem:[%s154 + $0x350] sm:$0xff]
        %v286 = vld [vmem:[%s154 + $0x358] sm:$0xff]
        %v287 = vld [vmem:[%s154 + $0x360] sm:$0xff]
        %v288 = vld [vmem:[%s154 + $0x368] sm:$0xff]
        %v289 = vld [vmem:[%s154 + $0x370] sm:$0xff]
        %v290 = vld [vmem:[%s154 + $0x378] sm:$0xff]
        %v291 = vld [vmem:[%s154 + $0x380] sm:$0xff]
        %v292 = vld [vmem:[%s154 + $0x388] sm:$0xff]
        %v293 = vld [vmem:[%s154 + $0x390] sm:$0xff]
        %v294 = vld [vmem:[%s154 + $0x398] sm:$0xff]
        %v295 = vld [vmem:[%s154 + $0x3a0] sm:$0xff]
        %v296 = vld [vmem:[%s154 + $0x3a8] sm:$0xff]
        %v297 = vld [vmem:[%s154 + $0x3b0] sm:$0xff]
        %v298 = vld [vmem:[%s154 + $0x3b8] sm:$0xff]
        %v299 = vld [vmem:[%s154 + $0x3c0] sm:$0xff]
        %v300 = vld [vmem:[%s154 + $0x3c8] sm:$0xff]
        %v301 = vld [vmem:[%s154 + $0x3d0] sm:$0xff]
        %v302 = vld [vmem:[%s154 + $0x3d8] sm:$0xff]
        %v303 = vld [vmem:[%s154 + $0x3e0] sm:$0xff]
        %v304 = vld [vmem:[%s154 + $0x3e8] sm:$0xff]
        %v305 = vld [vmem:[%s154 + $0x3f0] sm:$0xff]
        %v306 = vld [vmem:[%s154 + $0x3f8] sm:$0xff]
        %v307 = vld [vmem:[%s154 + $0x400] sm:$0xff]
        %v308 = vld [vmem:[%s154 + $0x408] sm:$0xff]
        %v309 = vld [vmem:[%s154 + $0x410] sm:$0xff]
        %v310 = vld [vmem:[%s154 + $0x418] sm:$0xff]
        %v311 = vld [vmem:[%s154 + $0x420] sm:$0xff]
        %v312 = vld [vmem:[%s154 + $0x428] sm:$0xff]
        %v313 = vld [vmem:[%s154 + $0x430] sm:$0xff]
        %v314 = vld [vmem:[%s154 + $0x438] sm:$0xff]
        %v315 = vld [vmem:[%s154 + $0x440] sm:$0xff]
        %v316 = vld [vmem:[%s154 + $0x448] sm:$0xff]
        %v317 = vld [vmem:[%s154 + $0x450] sm:$0xff]
        %v318 = vld [vmem:[%s154 + $0x458] sm:$0xff]
        %v319 = vld [vmem:[%s154 + $0x460] sm:$0xff]
        %v320 = vld [vmem:[%s154 + $0x468] sm:$0xff]
        %v321 = vld [vmem:[%s154 + $0x470] sm:$0xff]
        %v322 = vld [vmem:[%s154 + $0x478] sm:$0xff]
        %v323 = vld [vmem:[%s154 + $0x480] sm:$0xff]
        %v324 = vld [vmem:[%s154 + $0x488] sm:$0xff]
        %v325 = vld [vmem:[%s154 + $0x490] sm:$0xff]
        %v326 = vld [vmem:[%s154 + $0x498] sm:$0xff]
        %v327 = vld [vmem:[%s154 + $0x4a0] sm:$0xff]
        %v328 = vld [vmem:[%s154 + $0x4a8] sm:$0xff]
        %v329 = vld [vmem:[%s154 + $0x4b0] sm:$0xff]
        %v330 = vld [vmem:[%s154 + $0x4b8] sm:$0xff]
        %v331 = vld [vmem:[%s154 + $0x4c0] sm:$0xff]
        %v332 = vld [vmem:[%s154 + $0x4c8] sm:$0xff]
        %v333 = vld [vmem:[%s154 + $0x4d0] sm:$0xff]
        %v334 = vld [vmem:[%s154 + $0x4d8] sm:$0xff]
        %v335 = vld [vmem:[%s154 + $0x4e0] sm:$0xff]
        %v336 = vld [vmem:[%s154 + $0x4e8] sm:$0xff]
        %v337 = vld [vmem:[%s154 + $0x4f0] sm:$0xff]
        %v338 = vld [vmem:[%s154 + $0x4f8] sm:$0xff]
        %v339 = vld [vmem:[%s154 + $0x500] sm:$0xff]
        %v340 = vld [vmem:[%s154 + $0x508] sm:$0xff]
        %v341 = vld [vmem:[%s154 + $0x510] sm:$0xff]
        %v342 = vld [vmem:[%s154 + $0x518] sm:$0xff]
        %v343 = vld [vmem:[%s154 + $0x520] sm:$0xff]
        %v344 = vld [vmem:[%s154 + $0x528] sm:$0xff]
        %v345 = vld [vmem:[%s154 + $0x530] sm:$0xff]
        %v346 = vld [vmem:[%s154 + $0x538] sm:$0xff]
        %v347 = vld [vmem:[%s154 + $0x540] sm:$0xff]
        %v348 = vld [vmem:[%s154 + $0x548] sm:$0xff]
        %v349 = vld [vmem:[%s154 + $0x550] sm:$0xff]
        %v350 = vld [vmem:[%s154 + $0x558] sm:$0xff]
        %v351 = vld [vmem:[%s154 + $0x560] sm:$0xff]
        %v352 = vld [vmem:[%s154 + $0x568] sm:$0xff]
        %v353 = vld [vmem:[%s154 + $0x570] sm:$0xff]
        %v354 = vld [vmem:[%s154 + $0x578] sm:$0xff]
        %v355 = vld [vmem:[%s154 + $0x580] sm:$0xff]
        %v356 = vld [vmem:[%s154 + $0x588] sm:$0xff]
        %v357 = vld [vmem:[%s154 + $0x590] sm:$0xff]
        %v358 = vld [vmem:[%s154 + $0x598] sm:$0xff]
        %v359 = vld [vmem:[%s154 + $0x5a0] sm:$0xff]
        %v360 = vld [vmem:[%s154 + $0x5a8] sm:$0xff]
        %v361 = vld [vmem:[%s154 + $0x5b0] sm:$0xff]
        %v362 = vld [vmem:[%s154 + $0x5b8] sm:$0xff]
        %v363 = vld [vmem:[%s154 + $0x5c0] sm:$0xff]
        %v364 = vld [vmem:[%s154 + $0x5c8] sm:$0xff]
        %v365 = vld [vmem:[%s154 + $0x5d0] sm:$0xff]
        %v366 = vld [vmem:[%s154 + $0x5d8] sm:$0xff]
        %v367 = vld [vmem:[%s154 + $0x5e0] sm:$0xff]
        %v368 = vld [vmem:[%s154 + $0x5e8] sm:$0xff]
        %v369 = vld [vmem:[%s154 + $0x5f0] sm:$0xff]
        %v370 = vld [vmem:[%s154 + $0x5f8] sm:$0xff]
        %v371 = vld [vmem:[%s154 + $0x600] sm:$0xff]
        %v372 = vld [vmem:[%s154 + $0x608] sm:$0xff]
        %v373 = vld [vmem:[%s154 + $0x610] sm:$0xff]
        %v374 = vld [vmem:[%s154 + $0x618] sm:$0xff]
        %v375 = vld [vmem:[%s154 + $0x620] sm:$0xff]
        %v376 = vld [vmem:[%s154 + $0x628] sm:$0xff]
        %v377 = vld [vmem:[%s154 + $0x630] sm:$0xff]
        %v378 = vld [vmem:[%s154 + $0x638] sm:$0xff]
        %v379 = vld [vmem:[%s154 + $0x640] sm:$0xff]
        %v380 = vld [vmem:[%s154 + $0x648] sm:$0xff]
        %v381 = vld [vmem:[%s154 + $0x650] sm:$0xff]
        %v382 = vld [vmem:[%s154 + $0x658] sm:$0xff]
        %v383 = vld [vmem:[%s154 + $0x660] sm:$0xff]
        %v384 = vld [vmem:[%s154 + $0x668] sm:$0xff]
        %v385 = vld [vmem:[%s154 + $0x670] sm:$0xff]
        %v386 = vld [vmem:[%s154 + $0x678] sm:$0xff]
        %v387 = vld [vmem:[%s154 + $0x680] sm:$0xff]
        %v388 = vld [vmem:[%s154 + $0x688] sm:$0xff]
        %v389 = vld [vmem:[%s154 + $0x690] sm:$0xff]
        %v390 = vld [vmem:[%s154 + $0x698] sm:$0xff]
        %v391 = vld [vmem:[%s154 + $0x6a0] sm:$0xff]
        %v392 = vld [vmem:[%s154 + $0x6a8] sm:$0xff]
        %v393 = vld [vmem:[%s154 + $0x6b0] sm:$0xff]
        %v394 = vld [vmem:[%s154 + $0x6b8] sm:$0xff]
        %v395 = vld [vmem:[%s154 + $0x6c0] sm:$0xff]
        %v396 = vld [vmem:[%s154 + $0x6c8] sm:$0xff]
        %v397 = vld [vmem:[%s154 + $0x6d0] sm:$0xff]
        %v398 = vld [vmem:[%s154 + $0x6d8] sm:$0xff]
        %v399 = vld [vmem:[%s154 + $0x6e0] sm:$0xff]
        %v400 = vld [vmem:[%s154 + $0x6e8] sm:$0xff]
        %v401 = vld [vmem:[%s154 + $0x6f0] sm:$0xff]
        %v402 = vld [vmem:[%s154 + $0x6f8] sm:$0xff]
        %v403 = vld [vmem:[%s154 + $0x700] sm:$0xff]
        %v404 = vld [vmem:[%s154 + $0x708] sm:$0xff]
        %v405 = vld [vmem:[%s154 + $0x710] sm:$0xff]
        %v406 = vld [vmem:[%s154 + $0x718] sm:$0xff]
        %v407 = vld [vmem:[%s154 + $0x720] sm:$0xff]
        %v408 = vld [vmem:[%s154 + $0x728] sm:$0xff]
        %v409 = vld [vmem:[%s154 + $0x730] sm:$0xff]
        %v410 = vld [vmem:[%s154 + $0x738] sm:$0xff]
        %v411 = vld [vmem:[%s154 + $0x740] sm:$0xff]
        %v412 = vld [vmem:[%s154 + $0x748] sm:$0xff]
        %v413 = vld [vmem:[%s154 + $0x750] sm:$0xff]
        %v414 = vld [vmem:[%s154 + $0x758] sm:$0xff]
        %v415 = vld [vmem:[%s154 + $0x760] sm:$0xff]
        %v416 = vld [vmem:[%s154 + $0x768] sm:$0xff]
        %v417 = vld [vmem:[%s154 + $0x770] sm:$0xff]
        %v418 = vld [vmem:[%s154 + $0x778] sm:$0xff]
        %v419 = vld [vmem:[%s154 + $0x780] sm:$0xff]
        %v420 = vld [vmem:[%s154 + $0x788] sm:$0xff]
        %v421 = vld [vmem:[%s154 + $0x790] sm:$0xff]
        %v422 = vld [vmem:[%s154 + $0x798] sm:$0xff]
        %v423 = vld [vmem:[%s154 + $0x7a0] sm:$0xff]
        %v424 = vld [vmem:[%s154 + $0x7a8] sm:$0xff]
        %v425 = vld [vmem:[%s154 + $0x7b0] sm:$0xff]
        %v426 = vld [vmem:[%s154 + $0x7b8] sm:$0xff]
        %v427 = vld [vmem:[%s154 + $0x7c0] sm:$0xff]
        %v428 = vld [vmem:[%s154 + $0x7c8] sm:$0xff]
        %v429 = vld [vmem:[%s154 + $0x7d0] sm:$0xff]
        %v430 = vld [vmem:[%s154 + $0x7d8] sm:$0xff]
        %v431 = vld [vmem:[%s154 + $0x7e0] sm:$0xff]
        %v432 = vld [vmem:[%s154 + $0x7e8] sm:$0xff]
        %v433 = vld [vmem:[%s154 + $0x7f0] sm:$0xff]
        %v434 = vld [vmem:[%s154 + $0x7f8] sm:$0xff]
        %v437 = vcombine.high %v177, %v177
        %v439 = vunpack.c.l.s4 1966171168
        %v440 = vunpack.c.0.s8 %v439
        %v441 = vlaneseq
        %v442 = vshrl.u32 %v441, 7
        %v443 = vsub.s32 %v440, %v442
        %v444 = vrot.slane %v177, %v443
        %v446 = vunpack.c.l.s4 1966171168
        %v447 = vunpack.c.0.s8 %v446
        %v448 = vlaneseq
        %v449 = vshrl.u32 %v448, 7
        %v450 = vsub.s32 %v447, %v449
        %v451 = vrot.slane %v437, %v450
        %v452 = vcombine.high %v444, %v444
        %v453 = vcombine.high %v451, %v451
        %v455 = vunpack.c.l.s4 1966171168
        %v456 = vunpack.c.0.s8 %v455
        %v457 = vlaneseq
        %v458 = vshrl.u32 %v457, 7
        %v459 = vsub.s32 %v456, %v458
        %v460 = vrot.slane %v444, %v459
        %v462 = vunpack.c.l.s4 1966171168
        %v463 = vunpack.c.0.s8 %v462
        %v464 = vlaneseq
        %v465 = vshrl.u32 %v464, 7
        %v466 = vsub.s32 %v463, %v465
        %v467 = vrot.slane %v451, %v466
        %v469 = vunpack.c.l.s4 1966171168
        %v470 = vunpack.c.0.s8 %v469
        %v471 = vlaneseq
        %v472 = vshrl.u32 %v471, 7
        %v473 = vsub.s32 %v470, %v472
        %v474 = vrot.slane %v452, %v473
        %v476 = vunpack.c.l.s4 1966171168
        %v477 = vunpack.c.0.s8 %v476
        %v478 = vlaneseq
        %v479 = vshrl.u32 %v478, 7
        %v480 = vsub.s32 %v477, %v479
        %v481 = vrot.slane %v453, %v480
        %v482 = vcombine.high %v460, %v460
        %v483 = vcombine.high %v467, %v467
        %v484 = vcombine.high %v474, %v474
        %v485 = vcombine.high %v481, %v481
        %v486 = vcombine.high %v178, %v178
        %v488 = vunpack.c.l.s4 1966171168
        %v489 = vunpack.c.0.s8 %v488
        %v490 = vlaneseq
        %v491 = vshrl.u32 %v490, 7
        %v492 = vsub.s32 %v489, %v491
        %v493 = vrot.slane %v178, %v492
        %v495 = vunpack.c.l.s4 1966171168
        %v496 = vunpack.c.0.s8 %v495
        %v497 = vlaneseq
        %v498 = vshrl.u32 %v497, 7
        %v499 = vsub.s32 %v496, %v498
        %v500 = vrot.slane %v486, %v499
        %v501 = vcombine.high %v493, %v493
        %v502 = vcombine.high %v500, %v500
        %v504 = vunpack.c.l.s4 1966171168
        %v505 = vunpack.c.0.s8 %v504
        %v506 = vlaneseq
        %v507 = vshrl.u32 %v506, 7
        %v508 = vsub.s32 %v505, %v507
        %v509 = vrot.slane %v493, %v508
        %v511 = vunpack.c.l.s4 1966171168
        %v512 = vunpack.c.0.s8 %v511
        %v513 = vlaneseq
        %v514 = vshrl.u32 %v513, 7
        %v515 = vsub.s32 %v512, %v514
        %v516 = vrot.slane %v500, %v515
        %v518 = vunpack.c.l.s4 1966171168
        %v519 = vunpack.c.0.s8 %v518
        %v520 = vlaneseq
        %v521 = vshrl.u32 %v520, 7
        %v522 = vsub.s32 %v519, %v521
        %v523 = vrot.slane %v501, %v522
        %v525 = vunpack.c.l.s4 1966171168
        %v526 = vunpack.c.0.s8 %v525
        %v527 = vlaneseq
        %v528 = vshrl.u32 %v527, 7
        %v529 = vsub.s32 %v526, %v528
        %v530 = vrot.slane %v502, %v529
        %v531 = vcombine.high %v509, %v509
        %v532 = vcombine.high %v516, %v516
        %v533 = vcombine.high %v523, %v523
        %v534 = vcombine.high %v530, %v530
        %v807 = vunpack.c.l.b16 %v179
        %v808 = vunpack.c.h.b16 %v179
        %v809 = vunpack.c.l.b16 %v180
        %v810 = vunpack.c.h.b16 %v180
        %v811 = vunpack.c.l.b16 %v181
        %v812 = vunpack.c.h.b16 %v181
        %v813 = vunpack.c.l.b16 %v182
        %v814 = vunpack.c.h.b16 %v182
        %v815 = vunpack.c.l.b16 %v183
        %v816 = vunpack.c.h.b16 %v183
        %v817 = vunpack.c.l.b16 %v184
        %v818 = vunpack.c.h.b16 %v184
        %v819 = vunpack.c.l.b16 %v185
        %v820 = vunpack.c.h.b16 %v185
        %v821 = vunpack.c.l.b16 %v186
        %v822 = vunpack.c.h.b16 %v186
        %v823 = vunpack.c.l.b16 %v187
        %v824 = vunpack.c.h.b16 %v187
        %v825 = vunpack.c.l.b16 %v188
        %v826 = vunpack.c.h.b16 %v188
        %v827 = vunpack.c.l.b16 %v189
        %v828 = vunpack.c.h.b16 %v189
        %v829 = vunpack.c.l.b16 %v190
        %v830 = vunpack.c.h.b16 %v190
        %v831 = vunpack.c.l.b16 %v191
        %v832 = vunpack.c.h.b16 %v191
        %v833 = vunpack.c.l.b16 %v192
        %v834 = vunpack.c.h.b16 %v192
        %v835 = vunpack.c.l.b16 %v193
        %v836 = vunpack.c.h.b16 %v193
        %v837 = vunpack.c.l.b16 %v194
        %v838 = vunpack.c.h.b16 %v194
        %v839 = vunpack.c.l.b16 %v195
        %v840 = vunpack.c.h.b16 %v195
        %v841 = vunpack.c.l.b16 %v196
        %v842 = vunpack.c.h.b16 %v196
        %v843 = vunpack.c.l.b16 %v197
        %v844 = vunpack.c.h.b16 %v197
        %v845 = vunpack.c.l.b16 %v198
        %v846 = vunpack.c.h.b16 %v198
        %v847 = vunpack.c.l.b16 %v199
        %v848 = vunpack.c.h.b16 %v199
        %v849 = vunpack.c.l.b16 %v200
        %v850 = vunpack.c.h.b16 %v200
        %v851 = vunpack.c.l.b16 %v201
        %v852 = vunpack.c.h.b16 %v201
        %v853 = vunpack.c.l.b16 %v202
        %v854 = vunpack.c.h.b16 %v202
        %v855 = vunpack.c.l.b16 %v203
        %v856 = vunpack.c.h.b16 %v203
        %v857 = vunpack.c.l.b16 %v204
        %v858 = vunpack.c.h.b16 %v204
        %v859 = vunpack.c.l.b16 %v205
        %v860 = vunpack.c.h.b16 %v205
        %v861 = vunpack.c.l.b16 %v206
        %v862 = vunpack.c.h.b16 %v206
        %v863 = vunpack.c.l.b16 %v207
        %v864 = vunpack.c.h.b16 %v207
        %v865 = vunpack.c.l.b16 %v208
        %v866 = vunpack.c.h.b16 %v208
        %v867 = vunpack.c.l.b16 %v209
        %v868 = vunpack.c.h.b16 %v209
        %v869 = vunpack.c.l.b16 %v210
        %v870 = vunpack.c.h.b16 %v210
        %v871 = vunpack.c.l.b16 %v211
        %v872 = vunpack.c.h.b16 %v211
        %v873 = vunpack.c.l.b16 %v212
        %v874 = vunpack.c.h.b16 %v212
        %v875 = vunpack.c.l.b16 %v213
        %v876 = vunpack.c.h.b16 %v213
        %v877 = vunpack.c.l.b16 %v214
        %v878 = vunpack.c.h.b16 %v214
        %v879 = vunpack.c.l.b16 %v215
        %v880 = vunpack.c.h.b16 %v215
        %v881 = vunpack.c.l.b16 %v216
        %v882 = vunpack.c.h.b16 %v216
        %v883 = vunpack.c.l.b16 %v217
        %v884 = vunpack.c.h.b16 %v217
        %v885 = vunpack.c.l.b16 %v218
        %v886 = vunpack.c.h.b16 %v218
        %v887 = vunpack.c.l.b16 %v219
        %v888 = vunpack.c.h.b16 %v219
        %v889 = vunpack.c.l.b16 %v220
        %v890 = vunpack.c.h.b16 %v220
        %v891 = vunpack.c.l.b16 %v221
        %v892 = vunpack.c.h.b16 %v221
        %v893 = vunpack.c.l.b16 %v222
        %v894 = vunpack.c.h.b16 %v222
        %v895 = vunpack.c.l.b16 %v223
        %v896 = vunpack.c.h.b16 %v223
        %v897 = vunpack.c.l.b16 %v224
        %v898 = vunpack.c.h.b16 %v224
        %v899 = vunpack.c.l.b16 %v225
        %v900 = vunpack.c.h.b16 %v225
        %v901 = vunpack.c.l.b16 %v226
        %v902 = vunpack.c.h.b16 %v226
        %v903 = vunpack.c.l.b16 %v227
        %v904 = vunpack.c.h.b16 %v227
        %v905 = vunpack.c.l.b16 %v228
        %v906 = vunpack.c.h.b16 %v228
        %v907 = vunpack.c.l.b16 %v229
        %v908 = vunpack.c.h.b16 %v229
        %v909 = vunpack.c.l.b16 %v230
        %v910 = vunpack.c.h.b16 %v230
        %v911 = vunpack.c.l.b16 %v231
        %v912 = vunpack.c.h.b16 %v231
        %v913 = vunpack.c.l.b16 %v232
        %v914 = vunpack.c.h.b16 %v232
        %v915 = vunpack.c.l.b16 %v233
        %v916 = vunpack.c.h.b16 %v233
        %v917 = vunpack.c.l.b16 %v234
        %v918 = vunpack.c.h.b16 %v234
        %v919 = vunpack.c.l.b16 %v235
        %v920 = vunpack.c.h.b16 %v235
        %v921 = vunpack.c.l.b16 %v236
        %v922 = vunpack.c.h.b16 %v236
        %v923 = vunpack.c.l.b16 %v237
        %v924 = vunpack.c.h.b16 %v237
        %v925 = vunpack.c.l.b16 %v238
        %v926 = vunpack.c.h.b16 %v238
        %v927 = vunpack.c.l.b16 %v239
        %v928 = vunpack.c.h.b16 %v239
        %v929 = vunpack.c.l.b16 %v240
        %v930 = vunpack.c.h.b16 %v240
        %v931 = vunpack.c.l.b16 %v241
        %v932 = vunpack.c.h.b16 %v241
        %v933 = vunpack.c.l.b16 %v242
        %v934 = vunpack.c.h.b16 %v242
        %v935 = vunpack.c.l.b16 %v243
        %v936 = vunpack.c.h.b16 %v243
        %v937 = vunpack.c.l.b16 %v244
        %v938 = vunpack.c.h.b16 %v244
        %v939 = vunpack.c.l.b16 %v245
        %v940 = vunpack.c.h.b16 %v245
        %v941 = vunpack.c.l.b16 %v246
        %v942 = vunpack.c.h.b16 %v246
        %v943 = vunpack.c.l.b16 %v247
        %v944 = vunpack.c.h.b16 %v247
        %v945 = vunpack.c.l.b16 %v248
        %v946 = vunpack.c.h.b16 %v248
        %v947 = vunpack.c.l.b16 %v249
        %v948 = vunpack.c.h.b16 %v249
        %v949 = vunpack.c.l.b16 %v250
        %v950 = vunpack.c.h.b16 %v250
        %v951 = vunpack.c.l.b16 %v251
        %v952 = vunpack.c.h.b16 %v251
        %v953 = vunpack.c.l.b16 %v252
        %v954 = vunpack.c.h.b16 %v252
        %v955 = vunpack.c.l.b16 %v253
        %v956 = vunpack.c.h.b16 %v253
        %v957 = vunpack.c.l.b16 %v254
        %v958 = vunpack.c.h.b16 %v254
        %v959 = vunpack.c.l.b16 %v255
        %v960 = vunpack.c.h.b16 %v255
        %v961 = vunpack.c.l.b16 %v256
        %v962 = vunpack.c.h.b16 %v256
        %v963 = vunpack.c.l.b16 %v257
        %v964 = vunpack.c.h.b16 %v257
        %v965 = vunpack.c.l.b16 %v258
        %v966 = vunpack.c.h.b16 %v258
        %v967 = vunpack.c.l.b16 %v259
        %v968 = vunpack.c.h.b16 %v259
        %v969 = vunpack.c.l.b16 %v260
        %v970 = vunpack.c.h.b16 %v260
        %v971 = vunpack.c.l.b16 %v261
        %v972 = vunpack.c.h.b16 %v261
        %v973 = vunpack.c.l.b16 %v262
        %v974 = vunpack.c.h.b16 %v262
        %v975 = vunpack.c.l.b16 %v263
        %v976 = vunpack.c.h.b16 %v263
        %v977 = vunpack.c.l.b16 %v264
        %v978 = vunpack.c.h.b16 %v264
        %v979 = vunpack.c.l.b16 %v265
        %v980 = vunpack.c.h.b16 %v265
        %v981 = vunpack.c.l.b16 %v266
        %v982 = vunpack.c.h.b16 %v266
        %v983 = vunpack.c.l.b16 %v267
        %v984 = vunpack.c.h.b16 %v267
        %v985 = vunpack.c.l.b16 %v268
        %v986 = vunpack.c.h.b16 %v268
        %v987 = vunpack.c.l.b16 %v269
        %v988 = vunpack.c.h.b16 %v269
        %v989 = vunpack.c.l.b16 %v270
        %v990 = vunpack.c.h.b16 %v270
        %v991 = vunpack.c.l.b16 %v271
        %v992 = vunpack.c.h.b16 %v271
        %v993 = vunpack.c.l.b16 %v272
        %v994 = vunpack.c.h.b16 %v272
        %v995 = vunpack.c.l.b16 %v273
        %v996 = vunpack.c.h.b16 %v273
        %v997 = vunpack.c.l.b16 %v274
        %v998 = vunpack.c.h.b16 %v274
        %v999 = vunpack.c.l.b16 %v275
        %v1000 = vunpack.c.h.b16 %v275
        %v1001 = vunpack.c.l.b16 %v276
        %v1002 = vunpack.c.h.b16 %v276
        %v1003 = vunpack.c.l.b16 %v277
        %v1004 = vunpack.c.h.b16 %v277
        %v1005 = vunpack.c.l.b16 %v278
        %v1006 = vunpack.c.h.b16 %v278
        %v1007 = vunpack.c.l.b16 %v279
        %v1008 = vunpack.c.h.b16 %v279
        %v1009 = vunpack.c.l.b16 %v280
        %v1010 = vunpack.c.h.b16 %v280
        %v1011 = vunpack.c.l.b16 %v281
        %v1012 = vunpack.c.h.b16 %v281
        %v1013 = vunpack.c.l.b16 %v282
        %v1014 = vunpack.c.h.b16 %v282
        %v1015 = vunpack.c.l.b16 %v283
        %v1016 = vunpack.c.h.b16 %v283
        %v1017 = vunpack.c.l.b16 %v284
        %v1018 = vunpack.c.h.b16 %v284
        %v1019 = vunpack.c.l.b16 %v285
        %v1020 = vunpack.c.h.b16 %v285
        %v1021 = vunpack.c.l.b16 %v286
        %v1022 = vunpack.c.h.b16 %v286
        %v1023 = vunpack.c.l.b16 %v287
        %v1024 = vunpack.c.h.b16 %v287
        %v1025 = vunpack.c.l.b16 %v288
        %v1026 = vunpack.c.h.b16 %v288
        %v1027 = vunpack.c.l.b16 %v289
        %v1028 = vunpack.c.h.b16 %v289
        %v1029 = vunpack.c.l.b16 %v290
        %v1030 = vunpack.c.h.b16 %v290
        %v1031 = vunpack.c.l.b16 %v291
        %v1032 = vunpack.c.h.b16 %v291
        %v1033 = vunpack.c.l.b16 %v292
        %v1034 = vunpack.c.h.b16 %v292
        %v1035 = vunpack.c.l.b16 %v293
        %v1036 = vunpack.c.h.b16 %v293
        %v1037 = vunpack.c.l.b16 %v294
        %v1038 = vunpack.c.h.b16 %v294
        %v1039 = vunpack.c.l.b16 %v295
        %v1040 = vunpack.c.h.b16 %v295
        %v1041 = vunpack.c.l.b16 %v296
        %v1042 = vunpack.c.h.b16 %v296
        %v1043 = vunpack.c.l.b16 %v297
        %v1044 = vunpack.c.h.b16 %v297
        %v1045 = vunpack.c.l.b16 %v298
        %v1046 = vunpack.c.h.b16 %v298
        %v1047 = vunpack.c.l.b16 %v299
        %v1048 = vunpack.c.h.b16 %v299
        %v1049 = vunpack.c.l.b16 %v300
        %v1050 = vunpack.c.h.b16 %v300
        %v1051 = vunpack.c.l.b16 %v301
        %v1052 = vunpack.c.h.b16 %v301
        %v1053 = vunpack.c.l.b16 %v302
        %v1054 = vunpack.c.h.b16 %v302
        %v1055 = vunpack.c.l.b16 %v303
        %v1056 = vunpack.c.h.b16 %v303
        %v1057 = vunpack.c.l.b16 %v304
        %v1058 = vunpack.c.h.b16 %v304
        %v1059 = vunpack.c.l.b16 %v305
        %v1060 = vunpack.c.h.b16 %v305
        %v1061 = vunpack.c.l.b16 %v306
        %v1062 = vunpack.c.h.b16 %v306
        %v1063 = vunpack.c.l.b16 %v307
        %v1064 = vunpack.c.h.b16 %v307
        %v1065 = vunpack.c.l.b16 %v308
        %v1066 = vunpack.c.h.b16 %v308
        %v1067 = vunpack.c.l.b16 %v309
        %v1068 = vunpack.c.h.b16 %v309
        %v1069 = vunpack.c.l.b16 %v310
        %v1070 = vunpack.c.h.b16 %v310
        %v1071 = vunpack.c.l.b16 %v311
        %v1072 = vunpack.c.h.b16 %v311
        %v1073 = vunpack.c.l.b16 %v312
        %v1074 = vunpack.c.h.b16 %v312
        %v1075 = vunpack.c.l.b16 %v313
        %v1076 = vunpack.c.h.b16 %v313
        %v1077 = vunpack.c.l.b16 %v314
        %v1078 = vunpack.c.h.b16 %v314
        %v1079 = vunpack.c.l.b16 %v315
        %v1080 = vunpack.c.h.b16 %v315
        %v1081 = vunpack.c.l.b16 %v316
        %v1082 = vunpack.c.h.b16 %v316
        %v1083 = vunpack.c.l.b16 %v317
        %v1084 = vunpack.c.h.b16 %v317
        %v1085 = vunpack.c.l.b16 %v318
        %v1086 = vunpack.c.h.b16 %v318
        %v1087 = vunpack.c.l.b16 %v319
        %v1088 = vunpack.c.h.b16 %v319
        %v1089 = vunpack.c.l.b16 %v320
        %v1090 = vunpack.c.h.b16 %v320
        %v1091 = vunpack.c.l.b16 %v321
        %v1092 = vunpack.c.h.b16 %v321
        %v1093 = vunpack.c.l.b16 %v322
        %v1094 = vunpack.c.h.b16 %v322
        %v1095 = vunpack.c.l.b16 %v323
        %v1096 = vunpack.c.h.b16 %v323
        %v1097 = vunpack.c.l.b16 %v324
        %v1098 = vunpack.c.h.b16 %v324
        %v1099 = vunpack.c.l.b16 %v325
        %v1100 = vunpack.c.h.b16 %v325
        %v1101 = vunpack.c.l.b16 %v326
        %v1102 = vunpack.c.h.b16 %v326
        %v1103 = vunpack.c.l.b16 %v327
        %v1104 = vunpack.c.h.b16 %v327
        %v1105 = vunpack.c.l.b16 %v328
        %v1106 = vunpack.c.h.b16 %v328
        %v1107 = vunpack.c.l.b16 %v329
        %v1108 = vunpack.c.h.b16 %v329
        %v1109 = vunpack.c.l.b16 %v330
        %v1110 = vunpack.c.h.b16 %v330
        %v1111 = vunpack.c.l.b16 %v331
        %v1112 = vunpack.c.h.b16 %v331
        %v1113 = vunpack.c.l.b16 %v332
        %v1114 = vunpack.c.h.b16 %v332
        %v1115 = vunpack.c.l.b16 %v333
        %v1116 = vunpack.c.h.b16 %v333
        %v1117 = vunpack.c.l.b16 %v334
        %v1118 = vunpack.c.h.b16 %v334
        %v1119 = vunpack.c.l.b16 %v335
        %v1120 = vunpack.c.h.b16 %v335
        %v1121 = vunpack.c.l.b16 %v336
        %v1122 = vunpack.c.h.b16 %v336
        %v1123 = vunpack.c.l.b16 %v337
        %v1124 = vunpack.c.h.b16 %v337
        %v1125 = vunpack.c.l.b16 %v338
        %v1126 = vunpack.c.h.b16 %v338
        %v1127 = vunpack.c.l.b16 %v339
        %v1128 = vunpack.c.h.b16 %v339
        %v1129 = vunpack.c.l.b16 %v340
        %v1130 = vunpack.c.h.b16 %v340
        %v1131 = vunpack.c.l.b16 %v341
        %v1132 = vunpack.c.h.b16 %v341
        %v1133 = vunpack.c.l.b16 %v342
        %v1134 = vunpack.c.h.b16 %v342
        %v1135 = vunpack.c.l.b16 %v343
        %v1136 = vunpack.c.h.b16 %v343
        %v1137 = vunpack.c.l.b16 %v344
        %v1138 = vunpack.c.h.b16 %v344
        %v1139 = vunpack.c.l.b16 %v345
        %v1140 = vunpack.c.h.b16 %v345
        %v1141 = vunpack.c.l.b16 %v346
        %v1142 = vunpack.c.h.b16 %v346
        %v1143 = vunpack.c.l.b16 %v347
        %v1144 = vunpack.c.h.b16 %v347
        %v1145 = vunpack.c.l.b16 %v348
        %v1146 = vunpack.c.h.b16 %v348
        %v1147 = vunpack.c.l.b16 %v349
        %v1148 = vunpack.c.h.b16 %v349
        %v1149 = vunpack.c.l.b16 %v350
        %v1150 = vunpack.c.h.b16 %v350
        %v1151 = vunpack.c.l.b16 %v351
        %v1152 = vunpack.c.h.b16 %v351
        %v1153 = vunpack.c.l.b16 %v352
        %v1154 = vunpack.c.h.b16 %v352
        %v1155 = vunpack.c.l.b16 %v353
        %v1156 = vunpack.c.h.b16 %v353
        %v1157 = vunpack.c.l.b16 %v354
        %v1158 = vunpack.c.h.b16 %v354
        %v1159 = vunpack.c.l.b16 %v355
        %v1160 = vunpack.c.h.b16 %v355
        %v1161 = vunpack.c.l.b16 %v356
        %v1162 = vunpack.c.h.b16 %v356
        %v1163 = vunpack.c.l.b16 %v357
        %v1164 = vunpack.c.h.b16 %v357
        %v1165 = vunpack.c.l.b16 %v358
        %v1166 = vunpack.c.h.b16 %v358
        %v1167 = vunpack.c.l.b16 %v359
        %v1168 = vunpack.c.h.b16 %v359
        %v1169 = vunpack.c.l.b16 %v360
        %v1170 = vunpack.c.h.b16 %v360
        %v1171 = vunpack.c.l.b16 %v361
        %v1172 = vunpack.c.h.b16 %v361
        %v1173 = vunpack.c.l.b16 %v362
        %v1174 = vunpack.c.h.b16 %v362
        %v1175 = vunpack.c.l.b16 %v363
        %v1176 = vunpack.c.h.b16 %v363
        %v1177 = vunpack.c.l.b16 %v364
        %v1178 = vunpack.c.h.b16 %v364
        %v1179 = vunpack.c.l.b16 %v365
        %v1180 = vunpack.c.h.b16 %v365
        %v1181 = vunpack.c.l.b16 %v366
        %v1182 = vunpack.c.h.b16 %v366
        %v1183 = vunpack.c.l.b16 %v367
        %v1184 = vunpack.c.h.b16 %v367
        %v1185 = vunpack.c.l.b16 %v368
        %v1186 = vunpack.c.h.b16 %v368
        %v1187 = vunpack.c.l.b16 %v369
        %v1188 = vunpack.c.h.b16 %v369
        %v1189 = vunpack.c.l.b16 %v370
        %v1190 = vunpack.c.h.b16 %v370
        %v1191 = vunpack.c.l.b16 %v371
        %v1192 = vunpack.c.h.b16 %v371
        %v1193 = vunpack.c.l.b16 %v372
        %v1194 = vunpack.c.h.b16 %v372
        %v1195 = vunpack.c.l.b16 %v373
        %v1196 = vunpack.c.h.b16 %v373
        %v1197 = vunpack.c.l.b16 %v374
        %v1198 = vunpack.c.h.b16 %v374
        %v1199 = vunpack.c.l.b16 %v375
        %v1200 = vunpack.c.h.b16 %v375
        %v1201 = vunpack.c.l.b16 %v376
        %v1202 = vunpack.c.h.b16 %v376
        %v1203 = vunpack.c.l.b16 %v377
        %v1204 = vunpack.c.h.b16 %v377
        %v1205 = vunpack.c.l.b16 %v378
        %v1206 = vunpack.c.h.b16 %v378
        %v1207 = vunpack.c.l.b16 %v379
        %v1208 = vunpack.c.h.b16 %v379
        %v1209 = vunpack.c.l.b16 %v380
        %v1210 = vunpack.c.h.b16 %v380
        %v1211 = vunpack.c.l.b16 %v381
        %v1212 = vunpack.c.h.b16 %v381
        %v1213 = vunpack.c.l.b16 %v382
        %v1214 = vunpack.c.h.b16 %v382
        %v1215 = vunpack.c.l.b16 %v383
        %v1216 = vunpack.c.h.b16 %v383
        %v1217 = vunpack.c.l.b16 %v384
        %v1218 = vunpack.c.h.b16 %v384
        %v1219 = vunpack.c.l.b16 %v385
        %v1220 = vunpack.c.h.b16 %v385
        %v1221 = vunpack.c.l.b16 %v386
        %v1222 = vunpack.c.h.b16 %v386
        %v1223 = vunpack.c.l.b16 %v387
        %v1224 = vunpack.c.h.b16 %v387
        %v1225 = vunpack.c.l.b16 %v388
        %v1226 = vunpack.c.h.b16 %v388
        %v1227 = vunpack.c.l.b16 %v389
        %v1228 = vunpack.c.h.b16 %v389
        %v1229 = vunpack.c.l.b16 %v390
        %v1230 = vunpack.c.h.b16 %v390
        %v1231 = vunpack.c.l.b16 %v391
        %v1232 = vunpack.c.h.b16 %v391
        %v1233 = vunpack.c.l.b16 %v392
        %v1234 = vunpack.c.h.b16 %v392
        %v1235 = vunpack.c.l.b16 %v393
        %v1236 = vunpack.c.h.b16 %v393
        %v1237 = vunpack.c.l.b16 %v394
        %v1238 = vunpack.c.h.b16 %v394
        %v1239 = vunpack.c.l.b16 %v395
        %v1240 = vunpack.c.h.b16 %v395
        %v1241 = vunpack.c.l.b16 %v396
        %v1242 = vunpack.c.h.b16 %v396
        %v1243 = vunpack.c.l.b16 %v397
        %v1244 = vunpack.c.h.b16 %v397
        %v1245 = vunpack.c.l.b16 %v398
        %v1246 = vunpack.c.h.b16 %v398
        %v1247 = vunpack.c.l.b16 %v399
        %v1248 = vunpack.c.h.b16 %v399
        %v1249 = vunpack.c.l.b16 %v400
        %v1250 = vunpack.c.h.b16 %v400
        %v1251 = vunpack.c.l.b16 %v401
        %v1252 = vunpack.c.h.b16 %v401
        %v1253 = vunpack.c.l.b16 %v402
        %v1254 = vunpack.c.h.b16 %v402
        %v1255 = vunpack.c.l.b16 %v403
        %v1256 = vunpack.c.h.b16 %v403
        %v1257 = vunpack.c.l.b16 %v404
        %v1258 = vunpack.c.h.b16 %v404
        %v1259 = vunpack.c.l.b16 %v405
        %v1260 = vunpack.c.h.b16 %v405
        %v1261 = vunpack.c.l.b16 %v406
        %v1262 = vunpack.c.h.b16 %v406
        %v1263 = vunpack.c.l.b16 %v407
        %v1264 = vunpack.c.h.b16 %v407
        %v1265 = vunpack.c.l.b16 %v408
        %v1266 = vunpack.c.h.b16 %v408
        %v1267 = vunpack.c.l.b16 %v409
        %v1268 = vunpack.c.h.b16 %v409
        %v1269 = vunpack.c.l.b16 %v410
        %v1270 = vunpack.c.h.b16 %v410
        %v1271 = vunpack.c.l.b16 %v411
        %v1272 = vunpack.c.h.b16 %v411
        %v1273 = vunpack.c.l.b16 %v412
        %v1274 = vunpack.c.h.b16 %v412
        %v1275 = vunpack.c.l.b16 %v413
        %v1276 = vunpack.c.h.b16 %v413
        %v1277 = vunpack.c.l.b16 %v414
        %v1278 = vunpack.c.h.b16 %v414
        %v1279 = vunpack.c.l.b16 %v415
        %v1280 = vunpack.c.h.b16 %v415
        %v1281 = vunpack.c.l.b16 %v416
        %v1282 = vunpack.c.h.b16 %v416
        %v1283 = vunpack.c.l.b16 %v417
        %v1284 = vunpack.c.h.b16 %v417
        %v1285 = vunpack.c.l.b16 %v418
        %v1286 = vunpack.c.h.b16 %v418
        %v1287 = vunpack.c.l.b16 %v419
        %v1288 = vunpack.c.h.b16 %v419
        %v1289 = vunpack.c.l.b16 %v420
        %v1290 = vunpack.c.h.b16 %v420
        %v1291 = vunpack.c.l.b16 %v421
        %v1292 = vunpack.c.h.b16 %v421
        %v1293 = vunpack.c.l.b16 %v422
        %v1294 = vunpack.c.h.b16 %v422
        %v1295 = vunpack.c.l.b16 %v423
        %v1296 = vunpack.c.h.b16 %v423
        %v1297 = vunpack.c.l.b16 %v424
        %v1298 = vunpack.c.h.b16 %v424
        %v1299 = vunpack.c.l.b16 %v425
        %v1300 = vunpack.c.h.b16 %v425
        %v1301 = vunpack.c.l.b16 %v426
        %v1302 = vunpack.c.h.b16 %v426
        %v1303 = vunpack.c.l.b16 %v427
        %v1304 = vunpack.c.h.b16 %v427
        %v1305 = vunpack.c.l.b16 %v428
        %v1306 = vunpack.c.h.b16 %v428
        %v1307 = vunpack.c.l.b16 %v429
        %v1308 = vunpack.c.h.b16 %v429
        %v1309 = vunpack.c.l.b16 %v430
        %v1310 = vunpack.c.h.b16 %v430
        %v1311 = vunpack.c.l.b16 %v431
        %v1312 = vunpack.c.h.b16 %v431
        %v1313 = vunpack.c.l.b16 %v432
        %v1314 = vunpack.c.h.b16 %v432
        %v1315 = vunpack.c.l.b16 %v433
        %v1316 = vunpack.c.h.b16 %v433
        %v1317 = vunpack.c.l.b16 %v434
        %v1318 = vunpack.c.h.b16 %v434
        %v1319 = vpack.c.b16 %v809, %v807
        %v1320 = vpack.c.b16 %v810, %v808
        %v1321 = vpack.c.b16 %v813, %v811
        %v1322 = vpack.c.b16 %v814, %v812
        %v1323 = vpack.c.b16 %v817, %v815
        %v1324 = vpack.c.b16 %v818, %v816
        %v1325 = vpack.c.b16 %v821, %v819
        %v1326 = vpack.c.b16 %v822, %v820
        %v1327 = vpack.c.b16 %v825, %v823
        %v1328 = vpack.c.b16 %v826, %v824
        %v1329 = vpack.c.b16 %v829, %v827
        %v1330 = vpack.c.b16 %v830, %v828
        %v1331 = vpack.c.b16 %v833, %v831
        %v1332 = vpack.c.b16 %v834, %v832
        %v1333 = vpack.c.b16 %v837, %v835
        %v1334 = vpack.c.b16 %v838, %v836
        %v1335 = vpack.c.b16 %v841, %v839
        %v1336 = vpack.c.b16 %v842, %v840
        %v1337 = vpack.c.b16 %v845, %v843
        %v1338 = vpack.c.b16 %v846, %v844
        %v1339 = vpack.c.b16 %v849, %v847
        %v1340 = vpack.c.b16 %v850, %v848
        %v1341 = vpack.c.b16 %v853, %v851
        %v1342 = vpack.c.b16 %v854, %v852
        %v1343 = vpack.c.b16 %v857, %v855
        %v1344 = vpack.c.b16 %v858, %v856
        %v1345 = vpack.c.b16 %v861, %v859
        %v1346 = vpack.c.b16 %v862, %v860
        %v1347 = vpack.c.b16 %v865, %v863
        %v1348 = vpack.c.b16 %v866, %v864
        %v1349 = vpack.c.b16 %v869, %v867
        %v1350 = vpack.c.b16 %v870, %v868
        %v1351 = vpack.c.b16 %v873, %v871
        %v1352 = vpack.c.b16 %v874, %v872
        %v1353 = vpack.c.b16 %v877, %v875
        %v1354 = vpack.c.b16 %v878, %v876
        %v1355 = vpack.c.b16 %v881, %v879
        %v1356 = vpack.c.b16 %v882, %v880
        %v1357 = vpack.c.b16 %v885, %v883
        %v1358 = vpack.c.b16 %v886, %v884
        %v1359 = vpack.c.b16 %v889, %v887
        %v1360 = vpack.c.b16 %v890, %v888
        %v1361 = vpack.c.b16 %v893, %v891
        %v1362 = vpack.c.b16 %v894, %v892
        %v1363 = vpack.c.b16 %v897, %v895
        %v1364 = vpack.c.b16 %v898, %v896
        %v1365 = vpack.c.b16 %v901, %v899
        %v1366 = vpack.c.b16 %v902, %v900
        %v1367 = vpack.c.b16 %v905, %v903
        %v1368 = vpack.c.b16 %v906, %v904
        %v1369 = vpack.c.b16 %v909, %v907
        %v1370 = vpack.c.b16 %v910, %v908
        %v1371 = vpack.c.b16 %v913, %v911
        %v1372 = vpack.c.b16 %v914, %v912
        %v1373 = vpack.c.b16 %v917, %v915
        %v1374 = vpack.c.b16 %v918, %v916
        %v1375 = vpack.c.b16 %v921, %v919
        %v1376 = vpack.c.b16 %v922, %v920
        %v1377 = vpack.c.b16 %v925, %v923
        %v1378 = vpack.c.b16 %v926, %v924
        %v1379 = vpack.c.b16 %v929, %v927
        %v1380 = vpack.c.b16 %v930, %v928
        %v1381 = vpack.c.b16 %v933, %v931
        %v1382 = vpack.c.b16 %v934, %v932
        %v1383 = vpack.c.b16 %v937, %v935
        %v1384 = vpack.c.b16 %v938, %v936
        %v1385 = vpack.c.b16 %v941, %v939
        %v1386 = vpack.c.b16 %v942, %v940
        %v1387 = vpack.c.b16 %v945, %v943
        %v1388 = vpack.c.b16 %v946, %v944
        %v1389 = vpack.c.b16 %v949, %v947
        %v1390 = vpack.c.b16 %v950, %v948
        %v1391 = vpack.c.b16 %v953, %v951
        %v1392 = vpack.c.b16 %v954, %v952
        %v1393 = vpack.c.b16 %v957, %v955
        %v1394 = vpack.c.b16 %v958, %v956
        %v1395 = vpack.c.b16 %v961, %v959
        %v1396 = vpack.c.b16 %v962, %v960
        %v1397 = vpack.c.b16 %v965, %v963
        %v1398 = vpack.c.b16 %v966, %v964
        %v1399 = vpack.c.b16 %v969, %v967
        %v1400 = vpack.c.b16 %v970, %v968
        %v1401 = vpack.c.b16 %v973, %v971
        %v1402 = vpack.c.b16 %v974, %v972
        %v1403 = vpack.c.b16 %v977, %v975
        %v1404 = vpack.c.b16 %v978, %v976
        %v1405 = vpack.c.b16 %v981, %v979
        %v1406 = vpack.c.b16 %v982, %v980
        %v1407 = vpack.c.b16 %v985, %v983
        %v1408 = vpack.c.b16 %v986, %v984
        %v1409 = vpack.c.b16 %v989, %v987
        %v1410 = vpack.c.b16 %v990, %v988
        %v1411 = vpack.c.b16 %v993, %v991
        %v1412 = vpack.c.b16 %v994, %v992
        %v1413 = vpack.c.b16 %v997, %v995
        %v1414 = vpack.c.b16 %v998, %v996
        %v1415 = vpack.c.b16 %v1001, %v999
        %v1416 = vpack.c.b16 %v1002, %v1000
        %v1417 = vpack.c.b16 %v1005, %v1003
        %v1418 = vpack.c.b16 %v1006, %v1004
        %v1419 = vpack.c.b16 %v1009, %v1007
        %v1420 = vpack.c.b16 %v1010, %v1008
        %v1421 = vpack.c.b16 %v1013, %v1011
        %v1422 = vpack.c.b16 %v1014, %v1012
        %v1423 = vpack.c.b16 %v1017, %v1015
        %v1424 = vpack.c.b16 %v1018, %v1016
        %v1425 = vpack.c.b16 %v1021, %v1019
        %v1426 = vpack.c.b16 %v1022, %v1020
        %v1427 = vpack.c.b16 %v1025, %v1023
        %v1428 = vpack.c.b16 %v1026, %v1024
        %v1429 = vpack.c.b16 %v1029, %v1027
        %v1430 = vpack.c.b16 %v1030, %v1028
        %v1431 = vpack.c.b16 %v1033, %v1031
        %v1432 = vpack.c.b16 %v1034, %v1032
        %v1433 = vpack.c.b16 %v1037, %v1035
        %v1434 = vpack.c.b16 %v1038, %v1036
        %v1435 = vpack.c.b16 %v1041, %v1039
        %v1436 = vpack.c.b16 %v1042, %v1040
        %v1437 = vpack.c.b16 %v1045, %v1043
        %v1438 = vpack.c.b16 %v1046, %v1044
        %v1439 = vpack.c.b16 %v1049, %v1047
        %v1440 = vpack.c.b16 %v1050, %v1048
        %v1441 = vpack.c.b16 %v1053, %v1051
        %v1442 = vpack.c.b16 %v1054, %v1052
        %v1443 = vpack.c.b16 %v1057, %v1055
        %v1444 = vpack.c.b16 %v1058, %v1056
        %v1445 = vpack.c.b16 %v1061, %v1059
        %v1446 = vpack.c.b16 %v1062, %v1060
        %v1447 = vpack.c.b16 %v1065, %v1063
        %v1448 = vpack.c.b16 %v1066, %v1064
        %v1449 = vpack.c.b16 %v1069, %v1067
        %v1450 = vpack.c.b16 %v1070, %v1068
        %v1451 = vpack.c.b16 %v1073, %v1071
        %v1452 = vpack.c.b16 %v1074, %v1072
        %v1453 = vpack.c.b16 %v1077, %v1075
        %v1454 = vpack.c.b16 %v1078, %v1076
        %v1455 = vpack.c.b16 %v1081, %v1079
        %v1456 = vpack.c.b16 %v1082, %v1080
        %v1457 = vpack.c.b16 %v1085, %v1083
        %v1458 = vpack.c.b16 %v1086, %v1084
        %v1459 = vpack.c.b16 %v1089, %v1087
        %v1460 = vpack.c.b16 %v1090, %v1088
        %v1461 = vpack.c.b16 %v1093, %v1091
        %v1462 = vpack.c.b16 %v1094, %v1092
        %v1463 = vpack.c.b16 %v1097, %v1095
        %v1464 = vpack.c.b16 %v1098, %v1096
        %v1465 = vpack.c.b16 %v1101, %v1099
        %v1466 = vpack.c.b16 %v1102, %v1100
        %v1467 = vpack.c.b16 %v1105, %v1103
        %v1468 = vpack.c.b16 %v1106, %v1104
        %v1469 = vpack.c.b16 %v1109, %v1107
        %v1470 = vpack.c.b16 %v1110, %v1108
        %v1471 = vpack.c.b16 %v1113, %v1111
        %v1472 = vpack.c.b16 %v1114, %v1112
        %v1473 = vpack.c.b16 %v1117, %v1115
        %v1474 = vpack.c.b16 %v1118, %v1116
        %v1475 = vpack.c.b16 %v1121, %v1119
        %v1476 = vpack.c.b16 %v1122, %v1120
        %v1477 = vpack.c.b16 %v1125, %v1123
        %v1478 = vpack.c.b16 %v1126, %v1124
        %v1479 = vpack.c.b16 %v1129, %v1127
        %v1480 = vpack.c.b16 %v1130, %v1128
        %v1481 = vpack.c.b16 %v1133, %v1131
        %v1482 = vpack.c.b16 %v1134, %v1132
        %v1483 = vpack.c.b16 %v1137, %v1135
        %v1484 = vpack.c.b16 %v1138, %v1136
        %v1485 = vpack.c.b16 %v1141, %v1139
        %v1486 = vpack.c.b16 %v1142, %v1140
        %v1487 = vpack.c.b16 %v1145, %v1143
        %v1488 = vpack.c.b16 %v1146, %v1144
        %v1489 = vpack.c.b16 %v1149, %v1147
        %v1490 = vpack.c.b16 %v1150, %v1148
        %v1491 = vpack.c.b16 %v1153, %v1151
        %v1492 = vpack.c.b16 %v1154, %v1152
        %v1493 = vpack.c.b16 %v1157, %v1155
        %v1494 = vpack.c.b16 %v1158, %v1156
        %v1495 = vpack.c.b16 %v1161, %v1159
        %v1496 = vpack.c.b16 %v1162, %v1160
        %v1497 = vpack.c.b16 %v1165, %v1163
        %v1498 = vpack.c.b16 %v1166, %v1164
        %v1499 = vpack.c.b16 %v1169, %v1167
        %v1500 = vpack.c.b16 %v1170, %v1168
        %v1501 = vpack.c.b16 %v1173, %v1171
        %v1502 = vpack.c.b16 %v1174, %v1172
        %v1503 = vpack.c.b16 %v1177, %v1175
        %v1504 = vpack.c.b16 %v1178, %v1176
        %v1505 = vpack.c.b16 %v1181, %v1179
        %v1506 = vpack.c.b16 %v1182, %v1180
        %v1507 = vpack.c.b16 %v1185, %v1183
        %v1508 = vpack.c.b16 %v1186, %v1184
        %v1509 = vpack.c.b16 %v1189, %v1187
        %v1510 = vpack.c.b16 %v1190, %v1188
        %v1511 = vpack.c.b16 %v1193, %v1191
        %v1512 = vpack.c.b16 %v1194, %v1192
        %v1513 = vpack.c.b16 %v1197, %v1195
        %v1514 = vpack.c.b16 %v1198, %v1196
        %v1515 = vpack.c.b16 %v1201, %v1199
        %v1516 = vpack.c.b16 %v1202, %v1200
        %v1517 = vpack.c.b16 %v1205, %v1203
        %v1518 = vpack.c.b16 %v1206, %v1204
        %v1519 = vpack.c.b16 %v1209, %v1207
        %v1520 = vpack.c.b16 %v1210, %v1208
        %v1521 = vpack.c.b16 %v1213, %v1211
        %v1522 = vpack.c.b16 %v1214, %v1212
        %v1523 = vpack.c.b16 %v1217, %v1215
        %v1524 = vpack.c.b16 %v1218, %v1216
        %v1525 = vpack.c.b16 %v1221, %v1219
        %v1526 = vpack.c.b16 %v1222, %v1220
        %v1527 = vpack.c.b16 %v1225, %v1223
        %v1528 = vpack.c.b16 %v1226, %v1224
        %v1529 = vpack.c.b16 %v1229, %v1227
        %v1530 = vpack.c.b16 %v1230, %v1228
        %v1531 = vpack.c.b16 %v1233, %v1231
        %v1532 = vpack.c.b16 %v1234, %v1232
        %v1533 = vpack.c.b16 %v1237, %v1235
        %v1534 = vpack.c.b16 %v1238, %v1236
        %v1535 = vpack.c.b16 %v1241, %v1239
        %v1536 = vpack.c.b16 %v1242, %v1240
        %v1537 = vpack.c.b16 %v1245, %v1243
        %v1538 = vpack.c.b16 %v1246, %v1244
        %v1539 = vpack.c.b16 %v1249, %v1247
        %v1540 = vpack.c.b16 %v1250, %v1248
        %v1541 = vpack.c.b16 %v1253, %v1251
        %v1542 = vpack.c.b16 %v1254, %v1252
        %v1543 = vpack.c.b16 %v1257, %v1255
        %v1544 = vpack.c.b16 %v1258, %v1256
        %v1545 = vpack.c.b16 %v1261, %v1259
        %v1546 = vpack.c.b16 %v1262, %v1260
        %v1547 = vpack.c.b16 %v1265, %v1263
        %v1548 = vpack.c.b16 %v1266, %v1264
        %v1549 = vpack.c.b16 %v1269, %v1267
        %v1550 = vpack.c.b16 %v1270, %v1268
        %v1551 = vpack.c.b16 %v1273, %v1271
        %v1552 = vpack.c.b16 %v1274, %v1272
        %v1553 = vpack.c.b16 %v1277, %v1275
        %v1554 = vpack.c.b16 %v1278, %v1276
        %v1555 = vpack.c.b16 %v1281, %v1279
        %v1556 = vpack.c.b16 %v1282, %v1280
        %v1557 = vpack.c.b16 %v1285, %v1283
        %v1558 = vpack.c.b16 %v1286, %v1284
        %v1559 = vpack.c.b16 %v1289, %v1287
        %v1560 = vpack.c.b16 %v1290, %v1288
        %v1561 = vpack.c.b16 %v1293, %v1291
        %v1562 = vpack.c.b16 %v1294, %v1292
        %v1563 = vpack.c.b16 %v1297, %v1295
        %v1564 = vpack.c.b16 %v1298, %v1296
        %v1565 = vpack.c.b16 %v1301, %v1299
        %v1566 = vpack.c.b16 %v1302, %v1300
        %v1567 = vpack.c.b16 %v1305, %v1303
        %v1568 = vpack.c.b16 %v1306, %v1304
        %v1569 = vpack.c.b16 %v1309, %v1307
        %v1570 = vpack.c.b16 %v1310, %v1308
        %v1571 = vpack.c.b16 %v1313, %v1311
        %v1572 = vpack.c.b16 %v1314, %v1312
        %v1573 = vpack.c.b16 %v1317, %v1315
        %v1574 = vpack.c.b16 %v1318, %v1316
        %1831 = vmatprep.subr.bf16.mxu0 %v1320
        %1832 = vmatpush1.bf16.msra.mxu0 %v1319
        %1833 = vmatprep.subr.bf16.mxu0 %v1322
        %1834 = vmatpush1.bf16.msra.mxu0 %v1321
        %1835 = vmatprep.subr.bf16.mxu0 %v1324
        %1836 = vmatpush1.bf16.msra.mxu0 %v1323
        %1837 = vmatprep.subr.bf16.mxu0 %v1326
        %1838 = vmatpush1.bf16.msra.mxu0 %v1325
        %1839 = vmatprep.subr.bf16.mxu0 %v1328
        %1840 = vmatpush1.bf16.msra.mxu0 %v1327
        %1841 = vmatprep.subr.bf16.mxu0 %v1330
        %1842 = vmatpush1.bf16.msra.mxu0 %v1329
        %1843 = vmatprep.subr.bf16.mxu0 %v1332
        %1844 = vmatpush1.bf16.msra.mxu0 %v1331
        %1845 = vmatprep.subr.bf16.mxu0 %v1334
        %1846 = vmatpush1.bf16.msra.mxu0 %v1333
        %1847 = vmatprep.subr.bf16.mxu0 %v1336
        %1848 = vmatpush1.bf16.msra.mxu0 %v1335
        %1849 = vmatprep.subr.bf16.mxu0 %v1338
        %1850 = vmatpush1.bf16.msra.mxu0 %v1337
        %1851 = vmatprep.subr.bf16.mxu0 %v1340
        %1852 = vmatpush1.bf16.msra.mxu0 %v1339
        %1853 = vmatprep.subr.bf16.mxu0 %v1342
        %1854 = vmatpush1.bf16.msra.mxu0 %v1341
        %1855 = vmatprep.subr.bf16.mxu0 %v1344
        %1856 = vmatpush1.bf16.msra.mxu0 %v1343
        %1857 = vmatprep.subr.bf16.mxu0 %v1346
        %1858 = vmatpush1.bf16.msra.mxu0 %v1345
        %1859 = vmatprep.subr.bf16.mxu0 %v1348
        %1860 = vmatpush1.bf16.msra.mxu0 %v1347
        %1861 = vmatprep.subr.bf16.mxu0 %v1350
        %1862 = vmatpush1.bf16.msra.mxu0 %v1349
        %1863 = vmatprep.mubr.bf16.mxu0 %v474
        %1864 = vmatmul.mubr.bf16.gmra.mrb[0].mxu0 %v460
        %v1865 = vpop.f32.mrb[0].mxu0
        %v1866 = vadd.f32 0.0, %v1865
        %v1867 = vpop.f32.mrb[0].mxu0
        %v1868 = vadd.f32 0.0, %v1867
        %v1869 = vpop.f32.mrb[0].mxu0
        %v1870 = vpop.f32.mrb[0].mxu0
        %1871 = vdwg.mxu0
        %1872 = vmatprep.subr.bf16.mxu0 %v1352
        %1873 = vmatpush1.bf16.msra.mxu0 %v1351
        %1874 = vmatprep.subr.bf16.mxu0 %v1354
        %1875 = vmatpush1.bf16.msra.mxu0 %v1353
        %1876 = vmatprep.subr.bf16.mxu0 %v1356
        %1877 = vmatpush1.bf16.msra.mxu0 %v1355
        %1878 = vmatprep.subr.bf16.mxu0 %v1358
        %1879 = vmatpush1.bf16.msra.mxu0 %v1357
        %1880 = vmatprep.subr.bf16.mxu0 %v1360
        %1881 = vmatpush1.bf16.msra.mxu0 %v1359
        %1882 = vmatprep.subr.bf16.mxu0 %v1362
        %1883 = vmatpush1.bf16.msra.mxu0 %v1361
        %1884 = vmatprep.subr.bf16.mxu0 %v1364
        %1885 = vmatpush1.bf16.msra.mxu0 %v1363
        %1886 = vmatprep.subr.bf16.mxu0 %v1366
        %1887 = vmatpush1.bf16.msra.mxu0 %v1365
        %1888 = vmatprep.subr.bf16.mxu0 %v1368
        %1889 = vmatpush1.bf16.msra.mxu0 %v1367
        %1890 = vmatprep.subr.bf16.mxu0 %v1370
        %1891 = vmatpush1.bf16.msra.mxu0 %v1369
        %1892 = vmatprep.subr.bf16.mxu0 %v1372
        %1893 = vmatpush1.bf16.msra.mxu0 %v1371
        %1894 = vmatprep.subr.bf16.mxu0 %v1374
        %1895 = vmatpush1.bf16.msra.mxu0 %v1373
        %1896 = vmatprep.subr.bf16.mxu0 %v1376
        %1897 = vmatpush1.bf16.msra.mxu0 %v1375
        %1898 = vmatprep.subr.bf16.mxu0 %v1378
        %1899 = vmatpush1.bf16.msra.mxu0 %v1377
        %1900 = vmatprep.subr.bf16.mxu0 %v1380
        %1901 = vmatpush1.bf16.msra.mxu0 %v1379
        %1902 = vmatprep.subr.bf16.mxu0 %v1382
        %1903 = vmatpush1.bf16.msra.mxu0 %v1381
        %1904 = vmatprep.mubr.bf16.mxu0 %v484
        %1905 = vmatmul.mubr.bf16.gmra.mrb[0].mxu0 %v482
        %v1906 = vpop.f32.mrb[0].mxu0
        %v1907 = vadd.f32 %v1866, %v1906
        %v1908 = vpop.f32.mrb[0].mxu0
        %v1909 = vadd.f32 %v1868, %v1908
        %v1910 = vpop.f32.mrb[0].mxu0
        %v1911 = vpop.f32.mrb[0].mxu0
        %1912 = vdwg.mxu0
        %1913 = vmatprep.subr.bf16.mxu0 %v1384
        %1914 = vmatpush1.bf16.msra.mxu0 %v1383
        %1915 = vmatprep.subr.bf16.mxu0 %v1386
        %1916 = vmatpush1.bf16.msra.mxu0 %v1385
        %1917 = vmatprep.subr.bf16.mxu0 %v1388
        %1918 = vmatpush1.bf16.msra.mxu0 %v1387
        %1919 = vmatprep.subr.bf16.mxu0 %v1390
        %1920 = vmatpush1.bf16.msra.mxu0 %v1389
        %1921 = vmatprep.subr.bf16.mxu0 %v1392
        %1922 = vmatpush1.bf16.msra.mxu0 %v1391
        %1923 = vmatprep.subr.bf16.mxu0 %v1394
        %1924 = vmatpush1.bf16.msra.mxu0 %v1393
        %1925 = vmatprep.subr.bf16.mxu0 %v1396
        %1926 = vmatpush1.bf16.msra.mxu0 %v1395
        %1927 = vmatprep.subr.bf16.mxu0 %v1398
        %1928 = vmatpush1.bf16.msra.mxu0 %v1397
        %1929 = vmatprep.subr.bf16.mxu0 %v1400
        %1930 = vmatpush1.bf16.msra.mxu0 %v1399
        %1931 = vmatprep.subr.bf16.mxu0 %v1402
        %1932 = vmatpush1.bf16.msra.mxu0 %v1401
        %1933 = vmatprep.subr.bf16.mxu0 %v1404
        %1934 = vmatpush1.bf16.msra.mxu0 %v1403
        %1935 = vmatprep.subr.bf16.mxu0 %v1406
        %1936 = vmatpush1.bf16.msra.mxu0 %v1405
        %1937 = vmatprep.subr.bf16.mxu0 %v1408
        %1938 = vmatpush1.bf16.msra.mxu0 %v1407
        %1939 = vmatprep.subr.bf16.mxu0 %v1410
        %1940 = vmatpush1.bf16.msra.mxu0 %v1409
        %1941 = vmatprep.subr.bf16.mxu0 %v1412
        %1942 = vmatpush1.bf16.msra.mxu0 %v1411
        %1943 = vmatprep.subr.bf16.mxu0 %v1414
        %1944 = vmatpush1.bf16.msra.mxu0 %v1413
        %1945 = vmatprep.mubr.bf16.mxu0 %v481
        %1946 = vmatmul.mubr.bf16.gmra.mrb[0].mxu0 %v467
        %v1947 = vpop.f32.mrb[0].mxu0
        %v1948 = vadd.f32 %v1907, %v1947
        %v1949 = vpop.f32.mrb[0].mxu0
        %v1950 = vadd.f32 %v1909, %v1949
        %v1951 = vpop.f32.mrb[0].mxu0
        %v1952 = vpop.f32.mrb[0].mxu0
        %1953 = vdwg.mxu0
        %1954 = vmatprep.subr.bf16.mxu0 %v1416
        %1955 = vmatpush1.bf16.msra.mxu0 %v1415
        %1956 = vmatprep.subr.bf16.mxu0 %v1418
        %1957 = vmatpush1.bf16.msra.mxu0 %v1417
        %1958 = vmatprep.subr.bf16.mxu0 %v1420
        %1959 = vmatpush1.bf16.msra.mxu0 %v1419
        %1960 = vmatprep.subr.bf16.mxu0 %v1422
        %1961 = vmatpush1.bf16.msra.mxu0 %v1421
        %1962 = vmatprep.subr.bf16.mxu0 %v1424
        %1963 = vmatpush1.bf16.msra.mxu0 %v1423
        %1964 = vmatprep.subr.bf16.mxu0 %v1426
        %1965 = vmatpush1.bf16.msra.mxu0 %v1425
        %1966 = vmatprep.subr.bf16.mxu0 %v1428
        %1967 = vmatpush1.bf16.msra.mxu0 %v1427
        %1968 = vmatprep.subr.bf16.mxu0 %v1430
        %1969 = vmatpush1.bf16.msra.mxu0 %v1429
        %1970 = vmatprep.subr.bf16.mxu0 %v1432
        %1971 = vmatpush1.bf16.msra.mxu0 %v1431
        %1972 = vmatprep.subr.bf16.mxu0 %v1434
        %1973 = vmatpush1.bf16.msra.mxu0 %v1433
        %1974 = vmatprep.subr.bf16.mxu0 %v1436
        %1975 = vmatpush1.bf16.msra.mxu0 %v1435
        %1976 = vmatprep.subr.bf16.mxu0 %v1438
        %1977 = vmatpush1.bf16.msra.mxu0 %v1437
        %1978 = vmatprep.subr.bf16.mxu0 %v1440
        %1979 = vmatpush1.bf16.msra.mxu0 %v1439
        %1980 = vmatprep.subr.bf16.mxu0 %v1442
        %1981 = vmatpush1.bf16.msra.mxu0 %v1441
        %1982 = vmatprep.subr.bf16.mxu0 %v1444
        %1983 = vmatpush1.bf16.msra.mxu0 %v1443
        %1984 = vmatprep.subr.bf16.mxu0 %v1446
        %1985 = vmatpush1.bf16.msra.mxu0 %v1445
        %1986 = vmatprep.mubr.bf16.mxu0 %v485
        %1987 = vmatmul.mubr.bf16.gmra.mrb[0].mxu0 %v483
        %v1988 = vpop.f32.mrb[0].mxu0
        %v1989 = vadd.f32 %v1948, %v1988
        %v1990 = vpop.f32.mrb[0].mxu0
        %v1991 = vadd.f32 %v1950, %v1990
        %v1992 = vpop.f32.mrb[0].mxu0
        %v1993 = vpop.f32.mrb[0].mxu0
        %1994 = vdwg.mxu0
        %1995 = vmatprep.subr.bf16.mxu0 %v1448
        %1996 = vmatpush1.bf16.msra.mxu0 %v1447
        %1997 = vmatprep.subr.bf16.mxu0 %v1450
        %1998 = vmatpush1.bf16.msra.mxu0 %v1449
        %1999 = vmatprep.subr.bf16.mxu0 %v1452
        %2000 = vmatpush1.bf16.msra.mxu0 %v1451
        %2001 = vmatprep.subr.bf16.mxu0 %v1454
        %2002 = vmatpush1.bf16.msra.mxu0 %v1453
        %2003 = vmatprep.subr.bf16.mxu0 %v1456
        %2004 = vmatpush1.bf16.msra.mxu0 %v1455
        %2005 = vmatprep.subr.bf16.mxu0 %v1458
        %2006 = vmatpush1.bf16.msra.mxu0 %v1457
        %2007 = vmatprep.subr.bf16.mxu0 %v1460
        %2008 = vmatpush1.bf16.msra.mxu0 %v1459
        %2009 = vmatprep.subr.bf16.mxu0 %v1462
        %2010 = vmatpush1.bf16.msra.mxu0 %v1461
        %2011 = vmatprep.subr.bf16.mxu0 %v1464
        %2012 = vmatpush1.bf16.msra.mxu0 %v1463
        %2013 = vmatprep.subr.bf16.mxu0 %v1466
        %2014 = vmatpush1.bf16.msra.mxu0 %v1465
        %2015 = vmatprep.subr.bf16.mxu0 %v1468
        %2016 = vmatpush1.bf16.msra.mxu0 %v1467
        %2017 = vmatprep.subr.bf16.mxu0 %v1470
        %2018 = vmatpush1.bf16.msra.mxu0 %v1469
        %2019 = vmatprep.subr.bf16.mxu0 %v1472
        %2020 = vmatpush1.bf16.msra.mxu0 %v1471
        %2021 = vmatprep.subr.bf16.mxu0 %v1474
        %2022 = vmatpush1.bf16.msra.mxu0 %v1473
        %2023 = vmatprep.subr.bf16.mxu0 %v1476
        %2024 = vmatpush1.bf16.msra.mxu0 %v1475
        %2025 = vmatprep.subr.bf16.mxu0 %v1478
        %2026 = vmatpush1.bf16.msra.mxu0 %v1477
        %2027 = vmatprep.mubr.bf16.mxu0 %v523
        %2028 = vmatmul.mubr.bf16.gmra.mrb[0].mxu0 %v509
        %v2029 = vpop.f32.mrb[0].mxu0
        %v2030 = vadd.f32 %v1989, %v2029
        %v2031 = vpop.f32.mrb[0].mxu0
        %v2032 = vadd.f32 %v1991, %v2031
        %v2033 = vpop.f32.mrb[0].mxu0
        %v2034 = vpop.f32.mrb[0].mxu0
        %2035 = vdwg.mxu0
        %2036 = vmatprep.subr.bf16.mxu0 %v1480
        %2037 = vmatpush1.bf16.msra.mxu0 %v1479
        %2038 = vmatprep.subr.bf16.mxu0 %v1482
        %2039 = vmatpush1.bf16.msra.mxu0 %v1481
        %2040 = vmatprep.subr.bf16.mxu0 %v1484
        %2041 = vmatpush1.bf16.msra.mxu0 %v1483
        %2042 = vmatprep.subr.bf16.mxu0 %v1486
        %2043 = vmatpush1.bf16.msra.mxu0 %v1485
        %2044 = vmatprep.subr.bf16.mxu0 %v1488
        %2045 = vmatpush1.bf16.msra.mxu0 %v1487
        %2046 = vmatprep.subr.bf16.mxu0 %v1490
        %2047 = vmatpush1.bf16.msra.mxu0 %v1489
        %2048 = vmatprep.subr.bf16.mxu0 %v1492
        %2049 = vmatpush1.bf16.msra.mxu0 %v1491
        %2050 = vmatprep.subr.bf16.mxu0 %v1494
        %2051 = vmatpush1.bf16.msra.mxu0 %v1493
        %2052 = vmatprep.subr.bf16.mxu0 %v1496
        %2053 = vmatpush1.bf16.msra.mxu0 %v1495
        %2054 = vmatprep.subr.bf16.mxu0 %v1498
        %2055 = vmatpush1.bf16.msra.mxu0 %v1497
        %2056 = vmatprep.subr.bf16.mxu0 %v1500
        %2057 = vmatpush1.bf16.msra.mxu0 %v1499
        %2058 = vmatprep.subr.bf16.mxu0 %v1502
        %2059 = vmatpush1.bf16.msra.mxu0 %v1501
        %2060 = vmatprep.subr.bf16.mxu0 %v1504
        %2061 = vmatpush1.bf16.msra.mxu0 %v1503
        %2062 = vmatprep.subr.bf16.mxu0 %v1506
        %2063 = vmatpush1.bf16.msra.mxu0 %v1505
        %2064 = vmatprep.subr.bf16.mxu0 %v1508
        %2065 = vmatpush1.bf16.msra.mxu0 %v1507
        %2066 = vmatprep.subr.bf16.mxu0 %v1510
        %2067 = vmatpush1.bf16.msra.mxu0 %v1509
        %2068 = vmatprep.mubr.bf16.mxu0 %v533
        %2069 = vmatmul.mubr.bf16.gmra.mrb[0].mxu0 %v531
        %v2070 = vpop.f32.mrb[0].mxu0
        %v2071 = vadd.f32 %v2030, %v2070
        %v2072 = vpop.f32.mrb[0].mxu0
        %v2073 = vadd.f32 %v2032, %v2072
        %v2074 = vpop.f32.mrb[0].mxu0
        %v2075 = vpop.f32.mrb[0].mxu0
        %2076 = vdwg.mxu0
        %2077 = vmatprep.subr.bf16.mxu0 %v1512
        %2078 = vmatpush1.bf16.msra.mxu0 %v1511
        %2079 = vmatprep.subr.bf16.mxu0 %v1514
        %2080 = vmatpush1.bf16.msra.mxu0 %v1513
        %2081 = vmatprep.subr.bf16.mxu0 %v1516
        %2082 = vmatpush1.bf16.msra.mxu0 %v1515
        %2083 = vmatprep.subr.bf16.mxu0 %v1518
        %2084 = vmatpush1.bf16.msra.mxu0 %v1517
        %2085 = vmatprep.subr.bf16.mxu0 %v1520
        %2086 = vmatpush1.bf16.msra.mxu0 %v1519
        %2087 = vmatprep.subr.bf16.mxu0 %v1522
        %2088 = vmatpush1.bf16.msra.mxu0 %v1521
        %2089 = vmatprep.subr.bf16.mxu0 %v1524
        %2090 = vmatpush1.bf16.msra.mxu0 %v1523
        %2091 = vmatprep.subr.bf16.mxu0 %v1526
        %2092 = vmatpush1.bf16.msra.mxu0 %v1525
        %2093 = vmatprep.subr.bf16.mxu0 %v1528
        %2094 = vmatpush1.bf16.msra.mxu0 %v1527
        %2095 = vmatprep.subr.bf16.mxu0 %v1530
        %2096 = vmatpush1.bf16.msra.mxu0 %v1529
        %2097 = vmatprep.subr.bf16.mxu0 %v1532
        %2098 = vmatpush1.bf16.msra.mxu0 %v1531
        %2099 = vmatprep.subr.bf16.mxu0 %v1534
        %2100 = vmatpush1.bf16.msra.mxu0 %v1533
        %2101 = vmatprep.subr.bf16.mxu0 %v1536
        %2102 = vmatpush1.bf16.msra.mxu0 %v1535
        %2103 = vmatprep.subr.bf16.mxu0 %v1538
        %2104 = vmatpush1.bf16.msra.mxu0 %v1537
        %2105 = vmatprep.subr.bf16.mxu0 %v1540
        %2106 = vmatpush1.bf16.msra.mxu0 %v1539
        %2107 = vmatprep.subr.bf16.mxu0 %v1542
        %2108 = vmatpush1.bf16.msra.mxu0 %v1541
        %2109 = vmatprep.mubr.bf16.mxu0 %v530
        %2110 = vmatmul.mubr.bf16.gmra.mrb[0].mxu0 %v516
        %v2111 = vpop.f32.mrb[0].mxu0
        %v2112 = vadd.f32 %v2071, %v2111
        %v2113 = vpop.f32.mrb[0].mxu0
        %v2114 = vadd.f32 %v2073, %v2113
        %v2115 = vpop.f32.mrb[0].mxu0
        %v2116 = vpop.f32.mrb[0].mxu0
        %2117 = vdwg.mxu0
        %2118 = vmatprep.subr.bf16.mxu0 %v1544
        %2119 = vmatpush1.bf16.msra.mxu0 %v1543
        %2120 = vmatprep.subr.bf16.mxu0 %v1546
        %2121 = vmatpush1.bf16.msra.mxu0 %v1545
        %2122 = vmatprep.subr.bf16.mxu0 %v1548
        %2123 = vmatpush1.bf16.msra.mxu0 %v1547
        %2124 = vmatprep.subr.bf16.mxu0 %v1550
        %2125 = vmatpush1.bf16.msra.mxu0 %v1549
        %2126 = vmatprep.subr.bf16.mxu0 %v1552
        %2127 = vmatpush1.bf16.msra.mxu0 %v1551
        %2128 = vmatprep.subr.bf16.mxu0 %v1554
        %2129 = vmatpush1.bf16.msra.mxu0 %v1553
        %2130 = vmatprep.subr.bf16.mxu0 %v1556
        %2131 = vmatpush1.bf16.msra.mxu0 %v1555
        %2132 = vmatprep.subr.bf16.mxu0 %v1558
        %2133 = vmatpush1.bf16.msra.mxu0 %v1557
        %2134 = vmatprep.subr.bf16.mxu0 %v1560
        %2135 = vmatpush1.bf16.msra.mxu0 %v1559
        %2136 = vmatprep.subr.bf16.mxu0 %v1562
        %2137 = vmatpush1.bf16.msra.mxu0 %v1561
        %2138 = vmatprep.subr.bf16.mxu0 %v1564
        %2139 = vmatpush1.bf16.msra.mxu0 %v1563
        %2140 = vmatprep.subr.bf16.mxu0 %v1566
        %2141 = vmatpush1.bf16.msra.mxu0 %v1565
        %2142 = vmatprep.subr.bf16.mxu0 %v1568
        %2143 = vmatpush1.bf16.msra.mxu0 %v1567
        %2144 = vmatprep.subr.bf16.mxu0 %v1570
        %2145 = vmatpush1.bf16.msra.mxu0 %v1569
        %2146 = vmatprep.subr.bf16.mxu0 %v1572
        %2147 = vmatpush1.bf16.msra.mxu0 %v1571
        %2148 = vmatprep.subr.bf16.mxu0 %v1574
        %2149 = vmatpush1.bf16.msra.mxu0 %v1573
        %2150 = vmatprep.mubr.bf16.mxu0 %v534
        %2151 = vmatmul.mubr.bf16.gmra.mrb[0].mxu0 %v532
        %v2152 = vpop.f32.mrb[0].mxu0
        %v2153 = vadd.f32 %v2112, %v2152
        %v2154 = vpop.f32.mrb[0].mxu0
        %v2155 = vadd.f32 %v2114, %v2154
        %v2156 = vpop.f32.mrb[0].mxu0
        %v2157 = vpop.f32.mrb[0].mxu0
        %2158 = vdwg.mxu0
        %v2161 = vcombine.low %v2153, %v2155
        %v2163 = vunpack.c.l.s4 1966171168
        %v2164 = vunpack.c.0.s8 %v2163
        %v2165 = vlaneseq
        %v2166 = vshrl.u32 %v2165, 7
        %v2167 = vsub.s32 %v2164, %v2166
        %v2168 = vrot.slane %v2161, %v2167
        %v2170 = vunpack.c.l.s4 1966171168
        %v2171 = vunpack.c.0.s8 %v2170
        %v2172 = vlaneseq
        %v2173 = vshrl.u32 %v2172, 7
        %v2174 = vsub.s32 %v2171, %v2173
        %v2175 = vrot.slane %v2168, %v2174
        %v2177 = vlaneseq
        %vm2178 = vcmp.ge.s32.totalorder %v2177, 0
        %vm2179 = vcmp.lt.s32.totalorder %v2177, 256
        %vm2180 = vmand %vm2178, %vm2179
        %2181 = vst.msk [vmem:[%s174] sm:$0x3] %vm2180, %v2175
        %s2182 = sand.u32 %s75, 1
        %s2183 = scalar_lea.sflag [#allocation4], %s2182
        %s2184 = sand.u32 %s75, 1
        %s2185 = smul.addr %s2184, 2
        %s2186 = scalar_lea.vmem [#allocation7], %s2185
        // Predicated region
        $region37: #{tpu_custom_call.1} parent=27 // pred_check
          %p2187 = pneg %p85
        $region38: #{tpu_custom_call.1} parent=27 // pred_check_branch
          %2189 = sbr.rel (%p2187) target = $region40
        $region39: #{tpu_custom_call.1} parent=27 // pred_region
          %s2190 = smul.u32 2, %s20
          %s2192 = ssub.s32 32, 32
          %2193 = vsyncadd %s2183, %s2192
          %s2194 = smul.addr %s2190, 16
          %s2195 = scalar_lea.hbm %s2, %s2194
          %s2197 = sshll.u32 %s2186, 4
          %s2198 = int_to_ptr.vmem [resolvable:$true] %s2197
          %2200 = dma.vmem_to_hbm [thread:$0]  %s2198, 32, %s2195, %s2183
        $region40: #{tpu_custom_call.1} parent=27 // pred_fallthru
          _
      $region28: #{tpu_custom_call.1} parent=5 // pred_fallthru
        _
      %p2201 = scmp.le.s32.totalorder 2, %s15
      // Predicated region
      $region41: #{tpu_custom_call.1} parent=5 // pred_check
        %p2202 = pneg %p2201
      $region42: #{tpu_custom_call.1} parent=5 // pred_check_branch
        %2204 = sbr.rel (%p2202) target = $region44
      $region43: #{tpu_custom_call.1} parent=5 // pred_region
        %s2205 = ssub.s32 %s15, 2
        // Predicated region
        $region45: #{tpu_custom_call.1} parent=43 // pred_check
          %p2206 = pneg %p91
        $region46: #{tpu_custom_call.1} parent=43 // pred_check_branch
          %2208 = sbr.rel (%p2206) target = $region48
        $region47: #{tpu_custom_call.1} parent=43 // pred_region
          %s2209 = sand.u32 %s76, 1
          %s2210 = scalar_lea.sflag [#allocation4], %s2209
          %s2211 = sand.u32 %s76, 1
          %s2212 = smul.addr %s2211, 2
          %s2213 = scalar_lea.vmem [#allocation7], %s2212
          %2214 = dma.done %s2210, 32
        $region48: #{tpu_custom_call.1} parent=43 // pred_fallthru
          _
      $region44: #{tpu_custom_call.1} parent=5 // pred_fallthru
        _
    $region6: #{tpu_custom_call.1} parent=1 // loop_footer
      %s19 = sadd.s32 1, %s15
    $region7: #{tpu_custom_call.1} parent=1 // loop_footer_branch
      %14 = sbr.rel target = $region3
    $region8: #{tpu_custom_call.1} parent=1 // loop_exit
      _
    %2215 = vsyncpa [#allocation3], 1
    %s2216 = scalar_lea.sflag [#allocation3], 1
    %2217 = vsyncpa %s2216, 1
    %2218 = vsyncpa [#allocation6], 1
    %s2219 = scalar_lea.sflag [#allocation6], 1
    %2220 = vsyncpa %s2219, 1
    %2221 = vsyncpa [#allocation4], 1
    %s2222 = scalar_lea.sflag [#allocation4], 1
    %2223 = vsyncpa %s2222, 1

</llo_original>
